<compile_context>
chip_gen: v5e
topology: v5e:2x2
jax: 0.10.0
libtpu: 0.0.40
codegen_flags: <defaults>
</compile_context>

<pallas_src>
import functools
import numpy as np
import jax
import jax.numpy as jnp
from jax import lax
from jax.experimental import pallas as pl
from jax.experimental.pallas import tpu as pltpu

# ----------------------------- configuration --------------------------------
B = 2
C1 = 4            # in_chans1
C2 = 6            # in_chans2
D_MODEL = 32
NHEAD = 4
HD = D_MODEL // NHEAD
DFF = 64          # dim_feedforward
ADAPT = (11, 1)   # adapt_size1 == adapt_size2 -> L == 11 (matches x_embed length)
L = ADAPT[0] * ADAPT[1]
H1, W1 = 22, 8    # x1 spatial
H2, W2 = 16, 12   # x2 spatial (also final output spatial)
HW1 = H1 * W1     # 176
HW2 = H2 * W2     # 192
BN_EPS = 1e-5
LN_EPS = 1e-5
NEG_INF = -1e30   # finite "-inf" for the cross-batch attention mask

GEO_WIDTH = 192   # geometry slab lane width
W_WIDTH = 64      # weight slab lane width


# --------------------------- slab row layout ----------------------------------
def _pad8(n):
    return -(-n // 8) * 8


def _layout(pieces):
    """pieces: [(name, nrows)] -> ({name: 8-aligned row offset}, total rows)."""
    off, r = {}, 0
    for name, nrows in pieces:
        off[name] = r
        r += _pad8(nrows)
    return off, r


GEO_OFF, GEO_ROWS = _layout([('p1', L), ('p2', L), ('k2t', L), ('k1t', HW1)])
W_OFF, W_ROWS = _layout([
    ('wp1', C1), ('wp2', C2),
    ('wq', D_MODEL), ('wkv', D_MODEL), ('wo', D_MODEL),
    ('w1', D_MODEL), ('w2', DFF), ('woc', D_MODEL), ('woc2', B * C2),
    ('mask', B * L), ('qb', B * L), ('kvb', B * L),
    ('ob', 1), ('b1', 1), ('b2', 1),
    ('g2', 1), ('be2', 1), ('g3', 1), ('be3', 1),
])


# --------------------------- resampling matrices ------------------------------
def adaptive_matrix(in_size, out_size):
    """AdaptiveAvgPool1d as an (out, in) averaging matrix (PyTorch windows)."""
    m = np.zeros((out_size, in_size), np.float32)
    for i in range(out_size):
        start = (i * in_size) // out_size
        end = -((-(i + 1) * in_size) // out_size)      # ceil((i+1)*in/out)
        m[i, start:end] = 1.0 / (end - start)
    return m


def bilinear_matrix(in_size, out_size):
    """Bilinear resize (align_corners=True) as an (out, in) matrix."""
    m = np.zeros((out_size, in_size), np.float32)
    if in_size == 1:
        m[:, 0] = 1.0
        return m
    if out_size == 1:
        m[0, 0] = 1.0
        return m
    scale = (in_size - 1) / (out_size - 1)
    for j in range(out_size):
        src = j * scale
        lo = int(np.floor(src))
        hi = min(lo + 1, in_size - 1)
        w = src - lo
        m[j, lo] += 1.0 - w
        m[j, hi] += w
    return m


# -------------------------- position embedding --------------------------------
def sine_pos_embed(d, temperature=10000.0):
    """(11, d) sine/cosine positional embedding, same values as the PyTorch code."""
    x_embed = np.array([0.0, 0.1, 0.2, 0.3, 0.4, 0.5, 0.6, 0.7, 0.8, 0.9, 1.0],
                       dtype=np.float32)
    dim_t = np.arange(d, dtype=np.float32)
    dim_t = temperature ** (2.0 * np.floor(dim_t / 2.0) / d)
    pos_x = x_embed[:, None] / dim_t                               # (11, d)
    pos = np.stack([np.sin(pos_x[:, 0::2]), np.cos(pos_x[:, 1::2])],
                   axis=2).reshape(11, d).astype(np.float32)
    return pos


# ------------------------------ fused kernel ----------------------------------
def _layernorm(x, g, b):
    m = jnp.mean(x, axis=-1, keepdims=True)
    v = jnp.mean((x - m) ** 2, axis=-1, keepdims=True)
    return (x - m) * lax.rsqrt(v + LN_EPS) * g + b


def _fused_kernel(x1_ref, x2_ref, geo_ref, w_ref, out_ref):
    f32 = jnp.float32
    dot = functools.partial(jnp.dot, preferred_element_type=f32)

    def dot_c(a, b, ca, cb):        # contract dim `ca` of a with dim `cb` of b
        return lax.dot_general(a, b, (((ca,), (cb,)), ((), ())),
                               preferred_element_type=f32)

    def gpc(name, rows, cols):      # geometry-slab piece (static slice -> free)
        r = GEO_OFF[name]
        return geo_ref[r:r + rows, :cols]

    def wpc(name, rows, cols):      # weight-slab piece
        r = W_OFF[name]
        return w_ref[r:r + rows, :cols]

    x1 = x1_ref[...]                                   # (B*C1, HW1) channel-major
    x2 = x2_ref[...]                                   # (B*C2, HW2) channel-major

    # ---- to_patch1 / to_patch2: AdaptiveAvgPool2d (matmul on HW) + Conv2d(1x1) ----
    pool1 = dot_c(gpc('p1', L, HW1), x1, 1, 1)         # (L, B*C1)  cols = (b, c)
    pool2 = dot_c(gpc('p2', L, HW2), x2, 1, 1)         # (L, B*C2)
    pooled1 = jnp.concatenate([pool1[:, b * C1:(b + 1) * C1] for b in range(B)],
                              axis=0)                  # (B*L, C1)  batch folded
    pooled2 = jnp.concatenate([pool2[:, b * C2:(b + 1) * C2] for b in range(B)],
                              axis=0)                  # (B*L, C2)
    ktok = dot(pooled1, wpc('wp1', C1, D_MODEL))       # (B*L, D)  bias folded into kvb
    qtok = dot(pooled2, wpc('wp2', C2, D_MODEL))       # (B*L, D)  bias folded into qb/ob

    # ---- multi-head cross attention (pos & biases folded into qb / kvb constants) ----
    q = dot(qtok, wpc('wq', D_MODEL, D_MODEL)) + wpc('qb', B * L, D_MODEL)           # (B*L, D)
    kv = dot(ktok, wpc('wkv', D_MODEL, 2 * D_MODEL)) + wpc('kvb', B * L, 2 * D_MODEL)  # (B*L, 2D)
    k = kv[:, :D_MODEL]
    v = kv[:, D_MODEL:2 * D_MODEL]
    mask = wpc('mask', B * L, B * L)                   # block-diag 0 / -1e30

    ctx = []
    for h in range(NHEAD):                             # static unroll; heads = lane slices
        lo = h * HD
        logits = dot_c(q[:, lo:lo + HD], k[:, lo:lo + HD], 1, 1) + mask    # (B*L, B*L)
        logits = logits - jnp.max(logits, axis=-1, keepdims=True)
        p = jnp.exp(logits)
        attn = p * pl.reciprocal(jnp.sum(p, axis=-1, keepdims=True), approx=True)
        ctx.append(dot(attn, v[:, lo:lo + HD]))                            # (B*L, HD)
    ctx = jnp.concatenate(ctx, axis=1)                                     # (B*L, D)
    attn_out = dot(ctx, wpc('wo', D_MODEL, D_MODEL)) + wpc('ob', 1, D_MODEL)

    # ---- post-norm residual blocks (dropouts are identity at inference) ----
    x = qtok + attn_out                                                    # tgt + tgt2
    x = _layernorm(x, wpc('g2', 1, D_MODEL), wpc('be2', 1, D_MODEL))       # norm2
    hid = jnp.maximum(dot(x, wpc('w1', D_MODEL, DFF)) + wpc('b1', 1, DFF), 0.0)
    y = dot(hid, wpc('w2', DFF, D_MODEL)) + wpc('b2', 1, D_MODEL)
    tok = _layernorm(x + y, wpc('g3', 1, D_MODEL), wpc('be3', 1, D_MODEL))  # (B*L, D)

    # ---- out_conv(out): 1x1 conv (BN folded) + ReLU, bilinear (11,1)->(16,12) ----
    z = jnp.maximum(dot(tok, wpc('woc', D_MODEL, C2)), 0.0)                # (B*L, C2)
    k2t = gpc('k2t', L, HW2)
    branch_tr = jnp.concatenate(                                           # (B*C2, HW2)
        [dot_c(z[b * L:(b + 1) * L, :], k2t, 0, 0) for b in range(B)], axis=0)

    # ---- out_conv2(x1): block-diag 1x1 conv (BN folded) + ReLU, bilinear (22,8)->(16,12) ----
    y1 = jnp.maximum(dot(wpc('woc2', B * C2, B * C1), x1), 0.0)            # (B*C2, HW1)
    branch_x1 = dot(y1, gpc('k1t', HW1, HW2))                              # (B*C2, HW2)

    out_ref[...] = branch_x1 + branch_tr                                   # lane-dense store


# ------------------------------- parameters -----------------------------------
def init_params(key):
    ks = jax.random.split(key, 10)

    def nrm(k, shape, fan_in):
        return jax.random.normal(k, shape, jnp.float32) * (1.0 / np.sqrt(fan_in))

    bn_s = np.float32(1.0 / np.sqrt(1.0 + BN_EPS))   # BN eval: mean 0, var 1, gamma 1, beta 0
    z = lambda *s: jnp.zeros(s, jnp.float32)
    return {
        # to_patch1 / to_patch2 1x1 convs, weights stored as (Cin, D)
        'wp1': nrm(ks[0], (C1, D_MODEL), C1), 'bp1': z(1, D_MODEL),
        'wp2': nrm(ks[1], (C2, D_MODEL), C2), 'bp2': z(1, D_MODEL),
        # multi-head cross attention ((D, D) input-major weights)
        'wq': nrm(ks[2], (D_MODEL, D_MODEL), D_MODEL), 'bq': z(1, D_MODEL),
        'wk': nrm(ks[3], (D_MODEL, D_MODEL), D_MODEL), 'bk': z(1, D_MODEL),
        'wv': nrm(ks[4], (D_MODEL, D_MODEL), D_MODEL), 'bv': z(1, D_MODEL),
        'wo': nrm(ks[5], (D_MODEL, D_MODEL), D_MODEL), 'bo': z(1, D_MODEL),
        # FFN
        'w1': nrm(ks[6], (D_MODEL, DFF), D_MODEL), 'b1': z(1, DFF),
        'w2': nrm(ks[7], (DFF, D_MODEL), DFF), 'b2': z(1, D_MODEL),
        # layer norms (init_weights -> weight=1, bias=0)
        'ln2_g': jnp.ones((1, D_MODEL), jnp.float32), 'ln2_b': z(1, D_MODEL),
        'ln3_g': jnp.ones((1, D_MODEL), jnp.float32), 'ln3_b': z(1, D_MODEL),
        # out_conv (D -> C2) and out_conv2 (C2, C1); conv bias=False, BN scale folded
        'woc': nrm(ks[8], (D_MODEL, C2), D_MODEL) * bn_s,
        'woc2': nrm(ks[9], (C2, C1), C1) * bn_s,
    }


def pack_params(P):
    """One-time host-side folding + packing into the two constant slabs."""
    P = {k: np.asarray(v, np.float32) for k, v in P.items()}
    pos = sine_pos_embed(D_MODEL)                               # (L, D)
    scale = np.float32(1.0 / np.sqrt(HD))

    def put(slab, off, name, arr):
        r = off[name]
        slab[r:r + arr.shape[0], :arr.shape[1]] = arr

    # ---- geometry slab (192 lanes): pooling + bilinear operators ----
    geo = np.zeros((GEO_ROWS, GEO_WIDTH), np.float32)
    p1 = np.kron(adaptive_matrix(H1, ADAPT[0]), adaptive_matrix(W1, ADAPT[1]))   # (L, HW1)
    p2 = np.kron(adaptive_matrix(H2, ADAPT[0]), adaptive_matrix(W2, ADAPT[1]))   # (L, HW2)
    k1t = np.kron(bilinear_matrix(H1, H2), bilinear_matrix(W1, W2)).T            # (HW1, HW2)
    k2t = np.kron(bilinear_matrix(ADAPT[0], H2), bilinear_matrix(ADAPT[1], W2)).T  # (L, HW2)
    put(geo, GEO_OFF, 'p1', p1)
    put(geo, GEO_OFF, 'p2', p2)
    put(geo, GEO_OFF, 'k2t', k2t)
    put(geo, GEO_OFF, 'k1t', k1t)

    # ---- weight slab (64 lanes) ----
    w = np.zeros((W_ROWS, W_WIDTH), np.float32)
    wq_s = P['wq'] * scale                                       # fold 1/sqrt(HD) into Wq, bq
    bq_s = P['bq'] * scale
    # q = qtok@Wq_s + [(bp2 + pos)@Wq_s + bq_s]   (position-dependent bias, pre-tiled)
    qb = np.tile((P['bp2'] + pos) @ wq_s + bq_s, (B, 1))                      # (B*L, D)
    # k = ktok@Wk + [(bp1 + pos)@Wk + bk] ; v = ktok@Wv + [bp1@Wv + bv]
    kb = np.tile((P['bp1'] + pos) @ P['wk'] + P['bk'], (B, 1))                # (B*L, D)
    vb = np.tile(P['bp1'] @ P['wv'] + P['bv'], (B * L, 1))                    # (B*L, D)
    kvb = np.concatenate([kb, vb], axis=1)                                    # (B*L, 2D)
    wkv = np.concatenate([P['wk'], P['wv']], axis=1)                          # (D, 2D)
    ob = P['bo'] + P['bp2']                                                   # bo + conv bias (residual)
    # block-diagonal attention mask: queries only attend inside their own batch
    mask = np.full((B * L, B * L), NEG_INF, np.float32)
    for b in range(B):
        mask[b * L:(b + 1) * L, b * L:(b + 1) * L] = 0.0
    # block-diagonal out_conv2 weight so the conv runs on the batch-folded channel axis
    woc2_blk = np.zeros((B * C2, B * C1), np.float32)
    for b in range(B):
        woc2_blk[b * C2:(b + 1) * C2, b * C1:(b + 1) * C1] = P['woc2']

    put(w, W_OFF, 'wp1', P['wp1'])
    put(w, W_OFF, 'wp2', P['wp2'])
    put(w, W_OFF, 'wq', wq_s)
    put(w, W_OFF, 'wkv', wkv)
    put(w, W_OFF, 'wo', P['wo'])
    put(w, W_OFF, 'w1', P['w1'])
    put(w, W_OFF, 'w2', P['w2'])
    put(w, W_OFF, 'woc', P['woc'])
    put(w, W_OFF, 'woc2', woc2_blk)
    put(w, W_OFF, 'mask', mask)
    put(w, W_OFF, 'qb', qb)
    put(w, W_OFF, 'kvb', kvb)
    put(w, W_OFF, 'ob', ob)
    put(w, W_OFF, 'b1', P['b1'])
    put(w, W_OFF, 'b2', P['b2'])
    put(w, W_OFF, 'g2', P['ln2_g'])
    put(w, W_OFF, 'be2', P['ln2_b'])
    put(w, W_OFF, 'g3', P['ln3_g'])
    put(w, W_OFF, 'be3', P['ln3_b'])

    return {'geo': jnp.asarray(geo), 'w': jnp.asarray(w)}


# --------------------------------- forward ------------------------------------
def transfusion5(x1, x2, packed):
    b = x1.shape[0]
    assert b == B and x1.shape[1:] == (C1, H1, W1) and x2.shape[1:] == (C2, H2, W2)
    # free channel-major reshapes of NCHW (no host-side transposes)
    x1_flat = x1.reshape(b * C1, HW1)          # (8, 176)
    x2_flat = x2.reshape(b * C2, HW2)          # (12, 192)

    out = pl.pallas_call(
        _fused_kernel,
        out_shape=jax.ShapeDtypeStruct((b * C2, HW2), jnp.float32),
        in_specs=[pl.BlockSpec(memory_space=pltpu.MemorySpace.VMEM)] * 4,
        out_specs=pl.BlockSpec(memory_space=pltpu.MemorySpace.VMEM),
    )(x1_flat, x2_flat, packed['geo'], packed['w'])
    return out.reshape(b, C2, H2, W2)


# ----------------------------------- main --------------------------------------
if __name__ == "__main__":
    key = jax.random.PRNGKey(0)
    kx1, kx2, kp = jax.random.split(key, 3)
    x1 = jax.random.normal(kx1, (B, C1, H1, W1), jnp.float32)
    x2 = jax.random.normal(kx2, (B, C2, H2, W2), jnp.float32)
    params = init_params(kp)
    packed = pack_params(params)     # one-time host-side weight folding / slab packing

    fwd = jax.jit(transfusion5)
    out = jax.block_until_ready(fwd(x1, x2, packed))
    assert out.shape == (B, C2, H2, W2), out.shape
    assert bool(jnp.all(jnp.isfinite(out)))
    print("KERNEL_OK")
</pallas_src>

<mosaic_0001>
module attributes {stable_mosaic.version = 11 : i64} {
  func.func @_fused_kernel(%arg0: memref<8x176xf32, #tpu.memory_space<vmem>>, %arg1: memref<12x192xf32, #tpu.memory_space<vmem>>, %arg2: memref<224x192xf32, #tpu.memory_space<vmem>>, %arg3: memref<384x64xf32, #tpu.memory_space<vmem>>, %arg4: memref<12x192xf32, #tpu.memory_space<vmem>>) attributes {dimension_semantics = [], scalar_prefetch = 0 : i64, scratch_operands = 0 : i64, tpu.core_type = #tpu.core_type<tc>} {
    %c0 = arith.constant 0 : index
    %c0_0 = arith.constant 0 : index
    %0 = vector.load %arg0[%c0, %c0_0] : memref<8x176xf32, #tpu.memory_space<vmem>>, vector<8x176xf32>
    %c0_1 = arith.constant 0 : index
    %c0_2 = arith.constant 0 : index
    %1 = vector.load %arg1[%c0_1, %c0_2] : memref<12x192xf32, #tpu.memory_space<vmem>>, vector<12x192xf32>
    %c0_3 = arith.constant 0 : index
    %c0_4 = arith.constant 0 : index
    %2 = vector.load %arg2[%c0_3, %c0_4] : memref<224x192xf32, #tpu.memory_space<vmem>>, vector<11x176xf32>
    %cst = arith.constant dense<0.000000e+00> : vector<11x8xf32>
    %3 = tpu.matmul %2, %0, %cst {dimension_numbers = #tpu.dot_dimension_numbers<[1], [1], [0], [0], [0, 0, 1, 0], [], []>} : vector<11x176xf32>, vector<8x176xf32>, vector<11x8xf32> -> vector<11x8xf32>
    %c16 = arith.constant 16 : index
    %c0_5 = arith.constant 0 : index
    %4 = vector.load %arg2[%c16, %c0_5] : memref<224x192xf32, #tpu.memory_space<vmem>>, vector<11x192xf32>
    %cst_6 = arith.constant dense<0.000000e+00> : vector<11x12xf32>
    %5 = tpu.matmul %4, %1, %cst_6 {dimension_numbers = #tpu.dot_dimension_numbers<[1], [1], [0], [0], [0, 0, 1, 0], [], []>} : vector<11x192xf32>, vector<12x192xf32>, vector<11x12xf32> -> vector<11x12xf32>
    %6 = vector.extract_strided_slice %3 {offsets = [0, 0], sizes = [11, 4], strides = [1, 1]} : vector<11x8xf32> to vector<11x4xf32>
    %7 = vector.extract_strided_slice %3 {offsets = [0, 4], sizes = [11, 4], strides = [1, 1]} : vector<11x8xf32> to vector<11x4xf32>
    %8 = tpu.concatenate %6, %7 in 0 : vector<11x4xf32>, vector<11x4xf32> -> vector<22x4xf32>
    %9 = vector.extract_strided_slice %5 {offsets = [0, 0], sizes = [11, 6], strides = [1, 1]} : vector<11x12xf32> to vector<11x6xf32>
    %10 = vector.extract_strided_slice %5 {offsets = [0, 6], sizes = [11, 6], strides = [1, 1]} : vector<11x12xf32> to vector<11x6xf32>
    %11 = tpu.concatenate %9, %10 in 0 : vector<11x6xf32>, vector<11x6xf32> -> vector<22x6xf32>
    %c0_7 = arith.constant 0 : index
    %c0_8 = arith.constant 0 : index
    %12 = vector.load %arg3[%c0_7, %c0_8] : memref<384x64xf32, #tpu.memory_space<vmem>>, vector<4x32xf32>
    %cst_9 = arith.constant dense<0.000000e+00> : vector<22x32xf32>
    %13 = tpu.matmul %8, %12, %cst_9 {dimension_numbers = #tpu.dot_dimension_numbers<[1], [0], [0], [1], [0, 0, 1, 1], [], []>} : vector<22x4xf32>, vector<4x32xf32>, vector<22x32xf32> -> vector<22x32xf32>
    %c8 = arith.constant 8 : index
    %c0_10 = arith.constant 0 : index
    %14 = vector.load %arg3[%c8, %c0_10] : memref<384x64xf32, #tpu.memory_space<vmem>>, vector<6x32xf32>
    %cst_11 = arith.constant dense<0.000000e+00> : vector<22x32xf32>
    %15 = tpu.matmul %11, %14, %cst_11 {dimension_numbers = #tpu.dot_dimension_numbers<[1], [0], [0], [1], [0, 0, 1, 1], [], []>} : vector<22x6xf32>, vector<6x32xf32>, vector<22x32xf32> -> vector<22x32xf32>
    %c16_12 = arith.constant 16 : index
    %c0_13 = arith.constant 0 : index
    %16 = vector.load %arg3[%c16_12, %c0_13] : memref<384x64xf32, #tpu.memory_space<vmem>>, vector<32x32xf32>
    %cst_14 = arith.constant dense<0.000000e+00> : vector<22x32xf32>
    %17 = tpu.matmul %15, %16, %cst_14 {dimension_numbers = #tpu.dot_dimension_numbers<[1], [0], [0], [1], [0, 0, 1, 1], [], []>} : vector<22x32xf32>, vector<32x32xf32>, vector<22x32xf32> -> vector<22x32xf32>
    %c280 = arith.constant 280 : index
    %c0_15 = arith.constant 0 : index
    %18 = vector.load %arg3[%c280, %c0_15] : memref<384x64xf32, #tpu.memory_space<vmem>>, vector<22x32xf32>
    %19 = arith.addf %17, %18 : vector<22x32xf32>
    %c48 = arith.constant 48 : index
    %c0_16 = arith.constant 0 : index
    %20 = vector.load %arg3[%c48, %c0_16] : memref<384x64xf32, #tpu.memory_space<vmem>>, vector<32x64xf32>
    %cst_17 = arith.constant dense<0.000000e+00> : vector<22x64xf32>
    %21 = tpu.matmul %13, %20, %cst_17 {dimension_numbers = #tpu.dot_dimension_numbers<[1], [0], [0], [1], [0, 0, 1, 1], [], []>} : vector<22x32xf32>, vector<32x64xf32>, vector<22x64xf32> -> vector<22x64xf32>
    %c304 = arith.constant 304 : index
    %c0_18 = arith.constant 0 : index
    %22 = vector.load %arg3[%c304, %c0_18] : memref<384x64xf32, #tpu.memory_space<vmem>>, vector<22x64xf32>
    %23 = arith.addf %21, %22 : vector<22x64xf32>
    %24 = vector.extract_strided_slice %23 {offsets = [0, 0], sizes = [22, 32], strides = [1, 1]} : vector<22x64xf32> to vector<22x32xf32>
    %25 = vector.extract_strided_slice %23 {offsets = [0, 32], sizes = [22, 32], strides = [1, 1]} : vector<22x64xf32> to vector<22x32xf32>
    %c256 = arith.constant 256 : index
    %c0_19 = arith.constant 0 : index
    %26 = vector.load %arg3[%c256, %c0_19] : memref<384x64xf32, #tpu.memory_space<vmem>>, vector<22x22xf32>
    %27 = vector.extract_strided_slice %19 {offsets = [0, 0], sizes = [22, 8], strides = [1, 1]} : vector<22x32xf32> to vector<22x8xf32>
    %28 = vector.extract_strided_slice %24 {offsets = [0, 0], sizes = [22, 8], strides = [1, 1]} : vector<22x32xf32> to vector<22x8xf32>
    %cst_20 = arith.constant dense<0.000000e+00> : vector<22x22xf32>
    %29 = tpu.matmul %27, %28, %cst_20 {dimension_numbers = #tpu.dot_dimension_numbers<[1], [1], [0], [0], [0, 0, 1, 0], [], []>} : vector<22x8xf32>, vector<22x8xf32>, vector<22x22xf32> -> vector<22x22xf32>
    %30 = arith.addf %29, %26 : vector<22x22xf32>
    %cst_21 = arith.constant dense<0xFF800000> : vector<22xf32>
    %31 = vector.multi_reduction <maximumf>, %30, %cst_21 [1] : vector<22x22xf32> to vector<22xf32>
    %32 = vector.shape_cast %31 : vector<22xf32> to vector<22x1xf32>
    %33 = vector.broadcast %32 : vector<22x1xf32> to vector<22x22xf32>
    %34 = arith.subf %30, %33 : vector<22x22xf32>
    %35 = math.exp %34 : vector<22x22xf32>
    %cst_22 = arith.constant dense<0.000000e+00> : vector<22xf32>
    %36 = vector.multi_reduction <add>, %35, %cst_22 [1] : vector<22x22xf32> to vector<22xf32>
    %37 = vector.shape_cast %36 : vector<22xf32> to vector<22x1xf32>
    %38 = tpu.reciprocal %37 {approx = true} : vector<22x1xf32> -> vector<22x1xf32>
    %39 = vector.broadcast %38 : vector<22x1xf32> to vector<22x22xf32>
    %40 = arith.mulf %35, %39 : vector<22x22xf32>
    %41 = vector.extract_strided_slice %25 {offsets = [0, 0], sizes = [22, 8], strides = [1, 1]} : vector<22x32xf32> to vector<22x8xf32>
    %cst_23 = arith.constant dense<0.000000e+00> : vector<22x8xf32>
    %42 = tpu.matmul %40, %41, %cst_23 {dimension_numbers = #tpu.dot_dimension_numbers<[1], [0], [0], [1], [0, 0, 1, 1], [], []>} : vector<22x22xf32>, vector<22x8xf32>, vector<22x8xf32> -> vector<22x8xf32>
    %43 = vector.extract_strided_slice %19 {offsets = [0, 8], sizes = [22, 8], strides = [1, 1]} : vector<22x32xf32> to vector<22x8xf32>
    %44 = vector.extract_strided_slice %24 {offsets = [0, 8], sizes = [22, 8], strides = [1, 1]} : vector<22x32xf32> to vector<22x8xf32>
    %cst_24 = arith.constant dense<0.000000e+00> : vector<22x22xf32>
    %45 = tpu.matmul %43, %44, %cst_24 {dimension_numbers = #tpu.dot_dimension_numbers<[1], [1], [0], [0], [0, 0, 1, 0], [], []>} : vector<22x8xf32>, vector<22x8xf32>, vector<22x22xf32> -> vector<22x22xf32>
    %46 = arith.addf %45, %26 : vector<22x22xf32>
    %cst_25 = arith.constant dense<0xFF800000> : vector<22xf32>
    %47 = vector.multi_reduction <maximumf>, %46, %cst_25 [1] : vector<22x22xf32> to vector<22xf32>
    %48 = vector.shape_cast %47 : vector<22xf32> to vector<22x1xf32>
    %49 = vector.broadcast %48 : vector<22x1xf32> to vector<22x22xf32>
    %50 = arith.subf %46, %49 : vector<22x22xf32>
    %51 = math.exp %50 : vector<22x22xf32>
    %cst_26 = arith.constant dense<0.000000e+00> : vector<22xf32>
    %52 = vector.multi_reduction <add>, %51, %cst_26 [1] : vector<22x22xf32> to vector<22xf32>
    %53 = vector.shape_cast %52 : vector<22xf32> to vector<22x1xf32>
    %54 = tpu.reciprocal %53 {approx = true} : vector<22x1xf32> -> vector<22x1xf32>
    %55 = vector.broadcast %54 : vector<22x1xf32> to vector<22x22xf32>
    %56 = arith.mulf %51, %55 : vector<22x22xf32>
    %57 = vector.extract_strided_slice %25 {offsets = [0, 8], sizes = [22, 8], strides = [1, 1]} : vector<22x32xf32> to vector<22x8xf32>
    %cst_27 = arith.constant dense<0.000000e+00> : vector<22x8xf32>
    %58 = tpu.matmul %56, %57, %cst_27 {dimension_numbers = #tpu.dot_dimension_numbers<[1], [0], [0], [1], [0, 0, 1, 1], [], []>} : vector<22x22xf32>, vector<22x8xf32>, vector<22x8xf32> -> vector<22x8xf32>
    %59 = vector.extract_strided_slice %19 {offsets = [0, 16], sizes = [22, 8], strides = [1, 1]} : vector<22x32xf32> to vector<22x8xf32>
    %60 = vector.extract_strided_slice %24 {offsets = [0, 16], sizes = [22, 8], strides = [1, 1]} : vector<22x32xf32> to vector<22x8xf32>
    %cst_28 = arith.constant dense<0.000000e+00> : vector<22x22xf32>
    %61 = tpu.matmul %59, %60, %cst_28 {dimension_numbers = #tpu.dot_dimension_numbers<[1], [1], [0], [0], [0, 0, 1, 0], [], []>} : vector<22x8xf32>, vector<22x8xf32>, vector<22x22xf32> -> vector<22x22xf32>
    %62 = arith.addf %61, %26 : vector<22x22xf32>
    %cst_29 = arith.constant dense<0xFF800000> : vector<22xf32>
    %63 = vector.multi_reduction <maximumf>, %62, %cst_29 [1] : vector<22x22xf32> to vector<22xf32>
    %64 = vector.shape_cast %63 : vector<22xf32> to vector<22x1xf32>
    %65 = vector.broadcast %64 : vector<22x1xf32> to vector<22x22xf32>
    %66 = arith.subf %62, %65 : vector<22x22xf32>
    %67 = math.exp %66 : vector<22x22xf32>
    %cst_30 = arith.constant dense<0.000000e+00> : vector<22xf32>
    %68 = vector.multi_reduction <add>, %67, %cst_30 [1] : vector<22x22xf32> to vector<22xf32>
    %69 = vector.shape_cast %68 : vector<22xf32> to vector<22x1xf32>
    %70 = tpu.reciprocal %69 {approx = true} : vector<22x1xf32> -> vector<22x1xf32>
    %71 = vector.broadcast %70 : vector<22x1xf32> to vector<22x22xf32>
    %72 = arith.mulf %67, %71 : vector<22x22xf32>
    %73 = vector.extract_strided_slice %25 {offsets = [0, 16], sizes = [22, 8], strides = [1, 1]} : vector<22x32xf32> to vector<22x8xf32>
    %cst_31 = arith.constant dense<0.000000e+00> : vector<22x8xf32>
    %74 = tpu.matmul %72, %73, %cst_31 {dimension_numbers = #tpu.dot_dimension_numbers<[1], [0], [0], [1], [0, 0, 1, 1], [], []>} : vector<22x22xf32>, vector<22x8xf32>, vector<22x8xf32> -> vector<22x8xf32>
    %75 = vector.extract_strided_slice %19 {offsets = [0, 24], sizes = [22, 8], strides = [1, 1]} : vector<22x32xf32> to vector<22x8xf32>
    %76 = vector.extract_strided_slice %24 {offsets = [0, 24], sizes = [22, 8], strides = [1, 1]} : vector<22x32xf32> to vector<22x8xf32>
    %cst_32 = arith.constant dense<0.000000e+00> : vector<22x22xf32>
    %77 = tpu.matmul %75, %76, %cst_32 {dimension_numbers = #tpu.dot_dimension_numbers<[1], [1], [0], [0], [0, 0, 1, 0], [], []>} : vector<22x8xf32>, vector<22x8xf32>, vector<22x22xf32> -> vector<22x22xf32>
    %78 = arith.addf %77, %26 : vector<22x22xf32>
    %cst_33 = arith.constant dense<0xFF800000> : vector<22xf32>
    %79 = vector.multi_reduction <maximumf>, %78, %cst_33 [1] : vector<22x22xf32> to vector<22xf32>
    %80 = vector.shape_cast %79 : vector<22xf32> to vector<22x1xf32>
    %81 = vector.broadcast %80 : vector<22x1xf32> to vector<22x22xf32>
    %82 = arith.subf %78, %81 : vector<22x22xf32>
    %83 = math.exp %82 : vector<22x22xf32>
    %cst_34 = arith.constant dense<0.000000e+00> : vector<22xf32>
    %84 = vector.multi_reduction <add>, %83, %cst_34 [1] : vector<22x22xf32> to vector<22xf32>
    %85 = vector.shape_cast %84 : vector<22xf32> to vector<22x1xf32>
    %86 = tpu.reciprocal %85 {approx = true} : vector<22x1xf32> -> vector<22x1xf32>
    %87 = vector.broadcast %86 : vector<22x1xf32> to vector<22x22xf32>
    %88 = arith.mulf %83, %87 : vector<22x22xf32>
    %89 = vector.extract_strided_slice %25 {offsets = [0, 24], sizes = [22, 8], strides = [1, 1]} : vector<22x32xf32> to vector<22x8xf32>
    %cst_35 = arith.constant dense<0.000000e+00> : vector<22x8xf32>
    %90 = tpu.matmul %88, %89, %cst_35 {dimension_numbers = #tpu.dot_dimension_numbers<[1], [0], [0], [1], [0, 0, 1, 1], [], []>} : vector<22x22xf32>, vector<22x8xf32>, vector<22x8xf32> -> vector<22x8xf32>
    %91 = tpu.concatenate %42, %58, %74, %90 in 1 : vector<22x8xf32>, vector<22x8xf32>, vector<22x8xf32>, vector<22x8xf32> -> vector<22x32xf32>
    %c80 = arith.constant 80 : index
    %c0_36 = arith.constant 0 : index
    %92 = vector.load %arg3[%c80, %c0_36] : memref<384x64xf32, #tpu.memory_space<vmem>>, vector<32x32xf32>
    %cst_37 = arith.constant dense<0.000000e+00> : vector<22x32xf32>
    %93 = tpu.matmul %91, %92, %cst_37 {dimension_numbers = #tpu.dot_dimension_numbers<[1], [0], [0], [1], [0, 0, 1, 1], [], []>} : vector<22x32xf32>, vector<32x32xf32>, vector<22x32xf32> -> vector<22x32xf32>
    %c328 = arith.constant 328 : index
    %c0_38 = arith.constant 0 : index
    %94 = vector.load %arg3[%c328, %c0_38] : memref<384x64xf32, #tpu.memory_space<vmem>>, vector<1x32xf32>
    %95 = vector.broadcast %94 : vector<1x32xf32> to vector<22x32xf32>
    %96 = arith.addf %93, %95 : vector<22x32xf32>
    %97 = arith.addf %15, %96 : vector<22x32xf32>
    %c352 = arith.constant 352 : index
    %c0_39 = arith.constant 0 : index
    %98 = vector.load %arg3[%c352, %c0_39] : memref<384x64xf32, #tpu.memory_space<vmem>>, vector<1x32xf32>
    %c360 = arith.constant 360 : index
    %c0_40 = arith.constant 0 : index
    %99 = vector.load %arg3[%c360, %c0_40] : memref<384x64xf32, #tpu.memory_space<vmem>>, vector<1x32xf32>
    %cst_41 = arith.constant dense<0.000000e+00> : vector<22xf32>
    %100 = vector.multi_reduction <add>, %97, %cst_41 [1] : vector<22x32xf32> to vector<22xf32>
    %101 = vector.shape_cast %100 : vector<22xf32> to vector<22x1xf32>
    %cst_42 = arith.constant 3.200000e+01 : f32
    %102 = vector.broadcast %cst_42 : f32 to vector<22x1xf32>
    %103 = arith.divf %101, %102 : vector<22x1xf32>
    %104 = vector.broadcast %103 : vector<22x1xf32> to vector<22x32xf32>
    %105 = arith.subf %97, %104 : vector<22x32xf32>
    %106 = arith.mulf %105, %105 : vector<22x32xf32>
    %cst_43 = arith.constant dense<0.000000e+00> : vector<22xf32>
    %107 = vector.multi_reduction <add>, %106, %cst_43 [1] : vector<22x32xf32> to vector<22xf32>
    %108 = vector.shape_cast %107 : vector<22xf32> to vector<22x1xf32>
    %cst_44 = arith.constant 3.200000e+01 : f32
    %109 = vector.broadcast %cst_44 : f32 to vector<22x1xf32>
    %110 = arith.divf %108, %109 : vector<22x1xf32>
    %111 = vector.broadcast %103 : vector<22x1xf32> to vector<22x32xf32>
    %112 = arith.subf %97, %111 : vector<22x32xf32>
    %cst_45 = arith.constant 9.99999974E-6 : f32
    %113 = vector.broadcast %cst_45 : f32 to vector<22x1xf32>
    %114 = arith.addf %110, %113 : vector<22x1xf32>
    %115 = math.rsqrt %114 : vector<22x1xf32>
    %116 = vector.broadcast %115 : vector<22x1xf32> to vector<22x32xf32>
    %117 = arith.mulf %112, %116 : vector<22x32xf32>
    %118 = vector.broadcast %98 : vector<1x32xf32> to vector<22x32xf32>
    %119 = arith.mulf %117, %118 : vector<22x32xf32>
    %120 = vector.broadcast %99 : vector<1x32xf32> to vector<22x32xf32>
    %121 = arith.addf %119, %120 : vector<22x32xf32>
    %c112 = arith.constant 112 : index
    %c0_46 = arith.constant 0 : index
    %122 = vector.load %arg3[%c112, %c0_46] : memref<384x64xf32, #tpu.memory_space<vmem>>, vector<32x64xf32>
    %cst_47 = arith.constant dense<0.000000e+00> : vector<22x64xf32>
    %123 = tpu.matmul %121, %122, %cst_47 {dimension_numbers = #tpu.dot_dimension_numbers<[1], [0], [0], [1], [0, 0, 1, 1], [], []>} : vector<22x32xf32>, vector<32x64xf32>, vector<22x64xf32> -> vector<22x64xf32>
    %c336 = arith.constant 336 : index
    %c0_48 = arith.constant 0 : index
    %124 = vector.load %arg3[%c336, %c0_48] : memref<384x64xf32, #tpu.memory_space<vmem>>, vector<1x64xf32>
    %125 = vector.broadcast %124 : vector<1x64xf32> to vector<22x64xf32>
    %126 = arith.addf %123, %125 : vector<22x64xf32>
    %cst_49 = arith.constant 0.000000e+00 : f32
    %127 = vector.broadcast %cst_49 : f32 to vector<22x64xf32>
    %128 = arith.maximumf %126, %127 : vector<22x64xf32>
    %c144 = arith.constant 144 : index
    %c0_50 = arith.constant 0 : index
    %129 = vector.load %arg3[%c144, %c0_50] : memref<384x64xf32, #tpu.memory_space<vmem>>, vector<64x32xf32>
    %cst_51 = arith.constant dense<0.000000e+00> : vector<22x32xf32>
    %130 = tpu.matmul %128, %129, %cst_51 {dimension_numbers = #tpu.dot_dimension_numbers<[1], [0], [0], [1], [0, 0, 1, 1], [], []>} : vector<22x64xf32>, vector<64x32xf32>, vector<22x32xf32> -> vector<22x32xf32>
    %c344 = arith.constant 344 : index
    %c0_52 = arith.constant 0 : index
    %131 = vector.load %arg3[%c344, %c0_52] : memref<384x64xf32, #tpu.memory_space<vmem>>, vector<1x32xf32>
    %132 = vector.broadcast %131 : vector<1x32xf32> to vector<22x32xf32>
    %133 = arith.addf %130, %132 : vector<22x32xf32>
    %134 = arith.addf %121, %133 : vector<22x32xf32>
    %c368 = arith.constant 368 : index
    %c0_53 = arith.constant 0 : index
    %135 = vector.load %arg3[%c368, %c0_53] : memref<384x64xf32, #tpu.memory_space<vmem>>, vector<1x32xf32>
    %c376 = arith.constant 376 : index
    %c0_54 = arith.constant 0 : index
    %136 = vector.load %arg3[%c376, %c0_54] : memref<384x64xf32, #tpu.memory_space<vmem>>, vector<1x32xf32>
    %cst_55 = arith.constant dense<0.000000e+00> : vector<22xf32>
    %137 = vector.multi_reduction <add>, %134, %cst_55 [1] : vector<22x32xf32> to vector<22xf32>
    %138 = vector.shape_cast %137 : vector<22xf32> to vector<22x1xf32>
    %cst_56 = arith.constant 3.200000e+01 : f32
    %139 = vector.broadcast %cst_56 : f32 to vector<22x1xf32>
    %140 = arith.divf %138, %139 : vector<22x1xf32>
    %141 = vector.broadcast %140 : vector<22x1xf32> to vector<22x32xf32>
    %142 = arith.subf %134, %141 : vector<22x32xf32>
    %143 = arith.mulf %142, %142 : vector<22x32xf32>
    %cst_57 = arith.constant dense<0.000000e+00> : vector<22xf32>
    %144 = vector.multi_reduction <add>, %143, %cst_57 [1] : vector<22x32xf32> to vector<22xf32>
    %145 = vector.shape_cast %144 : vector<22xf32> to vector<22x1xf32>
    %cst_58 = arith.constant 3.200000e+01 : f32
    %146 = vector.broadcast %cst_58 : f32 to vector<22x1xf32>
    %147 = arith.divf %145, %146 : vector<22x1xf32>
    %148 = vector.broadcast %140 : vector<22x1xf32> to vector<22x32xf32>
    %149 = arith.subf %134, %148 : vector<22x32xf32>
    %cst_59 = arith.constant 9.99999974E-6 : f32
    %150 = vector.broadcast %cst_59 : f32 to vector<22x1xf32>
    %151 = arith.addf %147, %150 : vector<22x1xf32>
    %152 = math.rsqrt %151 : vector<22x1xf32>
    %153 = vector.broadcast %152 : vector<22x1xf32> to vector<22x32xf32>
    %154 = arith.mulf %149, %153 : vector<22x32xf32>
    %155 = vector.broadcast %135 : vector<1x32xf32> to vector<22x32xf32>
    %156 = arith.mulf %154, %155 : vector<22x32xf32>
    %157 = vector.broadcast %136 : vector<1x32xf32> to vector<22x32xf32>
    %158 = arith.addf %156, %157 : vector<22x32xf32>
    %c208 = arith.constant 208 : index
    %c0_60 = arith.constant 0 : index
    %159 = vector.load %arg3[%c208, %c0_60] : memref<384x64xf32, #tpu.memory_space<vmem>>, vector<32x6xf32>
    %cst_61 = arith.constant dense<0.000000e+00> : vector<22x6xf32>
    %160 = tpu.matmul %158, %159, %cst_61 {dimension_numbers = #tpu.dot_dimension_numbers<[1], [0], [0], [1], [0, 0, 1, 1], [], []>} : vector<22x32xf32>, vector<32x6xf32>, vector<22x6xf32> -> vector<22x6xf32>
    %cst_62 = arith.constant 0.000000e+00 : f32
    %161 = vector.broadcast %cst_62 : f32 to vector<22x6xf32>
    %162 = arith.maximumf %160, %161 : vector<22x6xf32>
    %c32 = arith.constant 32 : index
    %c0_63 = arith.constant 0 : index
    %163 = vector.load %arg2[%c32, %c0_63] : memref<224x192xf32, #tpu.memory_space<vmem>>, vector<11x192xf32>
    %164 = vector.extract_strided_slice %162 {offsets = [0, 0], sizes = [11, 6], strides = [1, 1]} : vector<22x6xf32> to vector<11x6xf32>
    %cst_64 = arith.constant dense<0.000000e+00> : vector<6x192xf32>
    %165 = tpu.matmul %164, %163, %cst_64 {dimension_numbers = #tpu.dot_dimension_numbers<[0], [0], [1], [1], [0, 1, 1, 1], [], []>} : vector<11x6xf32>, vector<11x192xf32>, vector<6x192xf32> -> vector<6x192xf32>
    %166 = vector.extract_strided_slice %162 {offsets = [11, 0], sizes = [11, 6], strides = [1, 1]} : vector<22x6xf32> to vector<11x6xf32>
    %cst_65 = arith.constant dense<0.000000e+00> : vector<6x192xf32>
    %167 = tpu.matmul %166, %163, %cst_65 {dimension_numbers = #tpu.dot_dimension_numbers<[0], [0], [1], [1], [0, 1, 1, 1], [], []>} : vector<11x6xf32>, vector<11x192xf32>, vector<6x192xf32> -> vector<6x192xf32>
    %168 = tpu.concatenate %165, %167 in 0 : vector<6x192xf32>, vector<6x192xf32> -> vector<12x192xf32>
    %c240 = arith.constant 240 : index
    %c0_66 = arith.constant 0 : index
    %169 = vector.load %arg3[%c240, %c0_66] : memref<384x64xf32, #tpu.memory_space<vmem>>, vector<12x8xf32>
    %cst_67 = arith.constant dense<0.000000e+00> : vector<12x176xf32>
    %170 = tpu.matmul %169, %0, %cst_67 {dimension_numbers = #tpu.dot_dimension_numbers<[1], [0], [0], [1], [0, 0, 1, 1], [], []>} : vector<12x8xf32>, vector<8x176xf32>, vector<12x176xf32> -> vector<12x176xf32>
    %cst_68 = arith.constant 0.000000e+00 : f32
    %171 = vector.broadcast %cst_68 : f32 to vector<12x176xf32>
    %172 = arith.maximumf %170, %171 : vector<12x176xf32>
    %c48_69 = arith.constant 48 : index
    %c0_70 = arith.constant 0 : index
    %173 = vector.load %arg2[%c48_69, %c0_70] : memref<224x192xf32, #tpu.memory_space<vmem>>, vector<176x192xf32>
    %cst_71 = arith.constant dense<0.000000e+00> : vector<12x192xf32>
    %174 = tpu.matmul %172, %173, %cst_71 {dimension_numbers = #tpu.dot_dimension_numbers<[1], [0], [0], [1], [0, 0, 1, 1], [], []>} : vector<12x176xf32>, vector<176x192xf32>, vector<12x192xf32> -> vector<12x192xf32>
    %175 = arith.addf %174, %168 : vector<12x192xf32>
    %c0_72 = arith.constant 0 : index
    %c0_73 = arith.constant 0 : index
    %176 = vector.load %arg4[%c0_72, %c0_73] : memref<12x192xf32, #tpu.memory_space<vmem>>, vector<12x192xf32>
    tpu.vector_store %arg4[%c0_72, %c0_73], %175 {strides = array<i32>} : memref<12x192xf32, #tpu.memory_space<vmem>>, vector<12x192xf32>,
    return
  }
}

</mosaic_0001>

<llo_original>
// kernel: transfusion5.1
$region0: #{transfusion5.1}
  #allocation0 [shape = 'u32[]', space=smem, size = 0x4, offset = 0x4, fixed_abs, tag = 'smem constant byte address 0x4 - core index']
  #allocation1 [shape = 'u32[72,128]{1,0:T(1,128)}', space=vmem, size = 0x9000, scoped, tag = 'internal scratch']
  %s0 = inlined_call_operand.vmem [shape: f32[8,176], index: 0, kind: input, shape index: {}]
  %s1 = inlined_call_operand.vmem [shape: f32[12,192], index: 1, kind: input, shape index: {}]
  %s2 = inlined_call_operand.vmem [shape: f32[224,192], index: 2, kind: input, shape index: {}]
  %s3 = inlined_call_operand.vmem [shape: f32[384,64], index: 3, kind: input, shape index: {}]
  %s4 = inlined_call_operand.vmem [shape: f32[12,192], index: 4, kind: output, shape index: {}]
  %s5 = sld [smem:[#allocation0]]
  $region26: #{transfusion5.1} parent=0
    _
  %s7 = ssub.s32 1, %s5
  %s8 = scalar_select 0, %s7, %s5
  // Predicated region
  $region2: #{transfusion5.1} parent=0 // pred_check
    _
  $region3: #{transfusion5.1} parent=0 // pred_check_branch
    %10 = sbr.rel (0) target = $region5
  $region4: #{transfusion5.1} parent=0 // pred_region
    _
  $region5: #{transfusion5.1} parent=0 // pred_fallthru
    _
  // Predicated region
  $region6: #{transfusion5.1} parent=0 // pred_check
    _
  $region7: #{transfusion5.1} parent=0 // pred_check_branch
    %12 = sbr.rel (0) target = $region9
  $region8: #{transfusion5.1} parent=0 // pred_region
    _
  $region9: #{transfusion5.1} parent=0 // pred_fallthru
    _
  // Predicated region
  $region10: #{transfusion5.1} parent=0 // pred_check
    _
  $region11: #{transfusion5.1} parent=0 // pred_check_branch
    %14 = sbr.rel (0) target = $region13
  $region12: #{transfusion5.1} parent=0 // pred_region
    _
  $region13: #{transfusion5.1} parent=0 // pred_fallthru
    _
  // Predicated region
  $region14: #{transfusion5.1} parent=0 // pred_check
    _
  $region15: #{transfusion5.1} parent=0 // pred_check_branch
    %16 = sbr.rel (0) target = $region17
  $region16: #{transfusion5.1} parent=0 // pred_region
    _
  $region17: #{transfusion5.1} parent=0 // pred_fallthru
    _
  %v17 = vld [vmem:[%s0] sm:$0xff]
  %v18 = vld [vmem:[%s0 + $0x8] sm:$0xff]
  %v19 = vld [vmem:[%s1] sm:$0xff]
  %v20 = vld [vmem:[%s1 + $0x8] sm:$0xff]
  %v21 = vld [vmem:[%s1 + $0x10] sm:$0xf]
  %v22 = vld [vmem:[%s1 + $0x18] sm:$0xf]
  %v23 = vld [vmem:[%s2] sm:$0xff]
  %v24 = vld [vmem:[%s2 + $0x8] sm:$0xff]
  %v25 = vld [vmem:[%s2 + $0x10] sm:$0x7]
  %v26 = vld [vmem:[%s2 + $0x18] sm:$0x7]
  %vm27 = vcmask 392192
  %v29 = vsel %vm27, %v24, 0
  %v32 = vsel %vm27, %v26, 0
  %v35 = vsel %vm27, %v18, 0
  %37 = vmatpush.xpose.msra.mxu0 0.0
  %38 = vmatpush.xpose.msra.mxu0 0.0
  %39 = vmatpush.xpose.msra.mxu0 0.0
  %40 = vmatpush.xpose.msra.mxu0 0.0
  %41 = vmatpush.xpose.msra.mxu0 0.0
  %42 = vmatpush.xpose.msra.mxu0 0.0
  %43 = vmatpush.xpose.msra.mxu0 0.0
  %44 = vmatpush.xpose.msra.mxu0 0.0
  %45 = vmatpush.xpose.msra.mxu0 0.0
  %46 = vmatpush.xpose.msra.mxu0 0.0
  %47 = vmatpush.xpose.msra.mxu0 0.0
  %48 = vmatpush.xpose.msra.mxu0 0.0
  %49 = vmatpush.xpose.msra.mxu0 0.0
  %50 = vmatpush.xpose.msra.mxu0 0.0
  %51 = vmatpush.xpose.msra.mxu0 0.0
  %52 = vmatpush.xpose.msra.mxu0 %v17
  %53 = vmatmul.f32.gmra.mxu0 %v23
  %v54 = vpop.f32.mrf.mxu0
  %v55 = vadd.f32 0.0, %v54
  %56 = vmatmul.f32.gmra.mxu0 %v25
  %v57 = vpop.f32.mrf.mxu0
  %v58 = vadd.f32 0.0, %v57
  %59 = vdwg.mxu0
  %60 = vmatpush.xpose.msra.mxu0 0.0
  %61 = vmatpush.xpose.msra.mxu0 0.0
  %62 = vmatpush.xpose.msra.mxu0 0.0
  %63 = vmatpush.xpose.msra.mxu0 0.0
  %64 = vmatpush.xpose.msra.mxu0 0.0
  %65 = vmatpush.xpose.msra.mxu0 0.0
  %66 = vmatpush.xpose.msra.mxu0 0.0
  %67 = vmatpush.xpose.msra.mxu0 0.0
  %68 = vmatpush.xpose.msra.mxu0 0.0
  %69 = vmatpush.xpose.msra.mxu0 0.0
  %70 = vmatpush.xpose.msra.mxu0 0.0
  %71 = vmatpush.xpose.msra.mxu0 0.0
  %72 = vmatpush.xpose.msra.mxu0 0.0
  %73 = vmatpush.xpose.msra.mxu0 0.0
  %74 = vmatpush.xpose.msra.mxu0 0.0
  %75 = vmatpush.xpose.msra.mxu0 %v35
  %76 = vmatmul.f32.gmra.mxu0 %v29
  %v77 = vpop.f32.mrf.mxu0
  %v78 = vadd.f32 %v55, %v77
  %79 = vmatmul.f32.gmra.mxu0 %v32
  %v80 = vpop.f32.mrf.mxu0
  %v81 = vadd.f32 %v58, %v80
  %82 = vdwg.mxu0
  %v83 = vld [vmem:[%s2 + $0x20] sm:$0xff]
  %v84 = vld [vmem:[%s2 + $0x28] sm:$0xff]
  %v85 = vld [vmem:[%s2 + $0x30] sm:$0x7]
  %v86 = vld [vmem:[%s2 + $0x38] sm:$0x7]
  %vm87 = vcmask 523264
  %v89 = vsel %vm87, %v84, 0
  %v92 = vsel %vm87, %v86, 0
  %v95 = vsel %vm87, %v20, 0
  %v98 = vsel %vm87, %v22, 0
  %100 = vmatpush.xpose.msra.mxu0 0.0
  %101 = vmatpush.xpose.msra.mxu0 0.0
  %102 = vmatpush.xpose.msra.mxu0 0.0
  %103 = vmatpush.xpose.msra.mxu0 0.0
  %104 = vmatpush.xpose.msra.mxu0 0.0
  %105 = vmatpush.xpose.msra.mxu0 0.0
  %106 = vmatpush.xpose.msra.mxu0 0.0
  %107 = vmatpush.xpose.msra.mxu0 0.0
  %108 = vmatpush.xpose.msra.mxu0 0.0
  %109 = vmatpush.xpose.msra.mxu0 0.0
  %110 = vmatpush.xpose.msra.mxu0 0.0
  %111 = vmatpush.xpose.msra.mxu0 0.0
  %112 = vmatpush.xpose.msra.mxu0 0.0
  %113 = vmatpush.xpose.msra.mxu0 0.0
  %114 = vmatpush.xpose.msra.mxu0 %v21
  %115 = vmatpush.xpose.msra.mxu0 %v19
  %116 = vmatmul.f32.gmra.mxu0 %v83
  %v117 = vpop.f32.mrf.mxu0
  %v118 = vadd.f32 0.0, %v117
  %119 = vmatmul.f32.gmra.mxu0 %v85
  %v120 = vpop.f32.mrf.mxu0
  %v121 = vadd.f32 0.0, %v120
  %122 = vdwg.mxu0
  %123 = vmatpush.xpose.msra.mxu0 0.0
  %124 = vmatpush.xpose.msra.mxu0 0.0
  %125 = vmatpush.xpose.msra.mxu0 0.0
  %126 = vmatpush.xpose.msra.mxu0 0.0
  %127 = vmatpush.xpose.msra.mxu0 0.0
  %128 = vmatpush.xpose.msra.mxu0 0.0
  %129 = vmatpush.xpose.msra.mxu0 0.0
  %130 = vmatpush.xpose.msra.mxu0 0.0
  %131 = vmatpush.xpose.msra.mxu0 0.0
  %132 = vmatpush.xpose.msra.mxu0 0.0
  %133 = vmatpush.xpose.msra.mxu0 0.0
  %134 = vmatpush.xpose.msra.mxu0 0.0
  %135 = vmatpush.xpose.msra.mxu0 0.0
  %136 = vmatpush.xpose.msra.mxu0 0.0
  %137 = vmatpush.xpose.msra.mxu0 %v98
  %138 = vmatpush.xpose.msra.mxu0 %v95
  %139 = vmatmul.f32.gmra.mxu0 %v89
  %v140 = vpop.f32.mrf.mxu0
  %v141 = vadd.f32 %v118, %v140
  %142 = vmatmul.f32.gmra.mxu0 %v92
  %v143 = vpop.f32.mrf.mxu0
  %v144 = vadd.f32 %v121, %v143
  %145 = vdwg.mxu0
  %vm148 = vcmask 1042432
  %v149 = vrot.slane %v78, 5
  %v150 = vrot.slane %v81, 5
  %v151 = vsel %vm148, %v149, %v150
  %152 = vrot.lane.b32.xlu0 %v149, 124
  %v153 = vpop.permute.xlu0 %152
  %154 = vrot.lane.b32.xlu0 %v151, 124
  %v155 = vpop.permute.xlu0 %154
  %v157 = vsel %vm148, %v81, %v153
  %v160 = vrot.slane %v141, 5
  %v161 = vrot.slane %v144, 5
  %v162 = vsel %vm148, %v160, %v161
  %163 = vrot.lane.b32.xlu0 %v160, 122
  %v164 = vpop.permute.xlu0 %163
  %165 = vrot.lane.b32.xlu0 %v162, 122
  %v166 = vpop.permute.xlu0 %165
  %v168 = vsel %vm148, %v144, %v164
  %v169 = vld [vmem:[%s3] sm:$0xf]
  %vm170 = vcmask 31744
  %v171 = vsel %vm170, %v78, 0
  %v174 = vsel %vm170, %v157, 0
  %v176 = vsel %vm170, %v155, 0
  %vm178 = vcmask 1043456
  %v180 = vsel %vm178, %v169, 0
  %182 = vmatpush.msra.mxu0 0.0
  %183 = vmatpush.msra.mxu0 0.0
  %184 = vmatpush.msra.mxu0 0.0
  %185 = vmatpush.msra.mxu0 0.0
  %186 = vmatpush.msra.mxu0 0.0
  %187 = vmatpush.msra.mxu0 0.0
  %188 = vmatpush.msra.mxu0 0.0
  %189 = vmatpush.msra.mxu0 0.0
  %190 = vmatpush.msra.mxu0 0.0
  %191 = vmatpush.msra.mxu0 0.0
  %192 = vmatpush.msra.mxu0 0.0
  %193 = vmatpush.msra.mxu0 0.0
  %194 = vmatpush.msra.mxu0 0.0
  %195 = vmatpush.msra.mxu0 0.0
  %196 = vmatpush.msra.mxu0 0.0
  %197 = vmatpush.msra.mxu0 %v180
  %198 = vmatmul.f32.gmra.mxu0 %v171
  %v199 = vpop.f32.mrf.mxu0
  %v200 = vadd.f32 0.0, %v199
  %201 = vmatmul.f32.gmra.mxu0 %v174
  %v202 = vpop.f32.mrf.mxu0
  %v203 = vadd.f32 0.0, %v202
  %204 = vmatmul.f32.gmra.mxu0 %v176
  %v205 = vpop.f32.mrf.mxu0
  %v206 = vadd.f32 0.0, %v205
  %207 = vdwg.mxu0
  %v208 = vld [vmem:[%s3 + $0x8] sm:$0x3f]
  %vm209 = vcmask 48128
  %v210 = vsel %vm209, %v141, 0
  %v213 = vsel %vm209, %v168, 0
  %v215 = vsel %vm209, %v166, 0
  %vm217 = vcmask 1045504
  %v219 = vsel %vm217, %v208, 0
  %221 = vmatpush.msra.mxu0 0.0
  %222 = vmatpush.msra.mxu0 0.0
  %223 = vmatpush.msra.mxu0 0.0
  %224 = vmatpush.msra.mxu0 0.0
  %225 = vmatpush.msra.mxu0 0.0
  %226 = vmatpush.msra.mxu0 0.0
  %227 = vmatpush.msra.mxu0 0.0
  %228 = vmatpush.msra.mxu0 0.0
  %229 = vmatpush.msra.mxu0 0.0
  %230 = vmatpush.msra.mxu0 0.0
  %231 = vmatpush.msra.mxu0 0.0
  %232 = vmatpush.msra.mxu0 0.0
  %233 = vmatpush.msra.mxu0 0.0
  %234 = vmatpush.msra.mxu0 0.0
  %235 = vmatpush.msra.mxu0 0.0
  %236 = vmatpush.msra.mxu0 %v219
  %237 = vmatmul.f32.gmra.mxu0 %v210
  %v238 = vpop.f32.mrf.mxu0
  %v239 = vadd.f32 0.0, %v238
  %240 = vmatmul.f32.gmra.mxu0 %v213
  %v241 = vpop.f32.mrf.mxu0
  %v242 = vadd.f32 0.0, %v241
  %243 = vmatmul.f32.gmra.mxu0 %v215
  %v244 = vpop.f32.mrf.mxu0
  %v245 = vadd.f32 0.0, %v244
  %246 = vdwg.mxu0
  %v247 = vld [vmem:[%s3 + $0x10] sm:$0xff]
  %v248 = vld [vmem:[%s3 + $0x18] sm:$0xff]
  %v249 = vld [vmem:[%s3 + $0x20] sm:$0xff]
  %v250 = vld [vmem:[%s3 + $0x28] sm:$0xff]
  %v251 = vld [vmem:[%s3 + $0x118] sm:$0xff]
  %v252 = vld [vmem:[%s3 + $0x120] sm:$0xff]
  %v253 = vld [vmem:[%s3 + $0x128] sm:$0x3f]
  %vm254 = vcmask 261120
  %v256 = vsel %vm254, %v239, 0
  %v259 = vsel %vm254, %v242, 0
  %v262 = vsel %vm254, %v245, 0
  %264 = vmatpush.msra.mxu0 0.0
  %265 = vmatpush.msra.mxu0 0.0
  %266 = vmatpush.msra.mxu0 0.0
  %267 = vmatpush.msra.mxu0 0.0
  %268 = vmatpush.msra.mxu0 0.0
  %269 = vmatpush.msra.mxu0 0.0
  %270 = vmatpush.msra.mxu0 0.0
  %271 = vmatpush.msra.mxu0 0.0
  %272 = vmatpush.msra.mxu0 0.0
  %273 = vmatpush.msra.mxu0 0.0
  %274 = vmatpush.msra.mxu0 0.0
  %275 = vmatpush.msra.mxu0 0.0
  %276 = vmatpush.msra.mxu0 %v250
  %277 = vmatpush.msra.mxu0 %v249
  %278 = vmatpush.msra.mxu0 %v248
  %279 = vmatpush.msra.mxu0 %v247
  %280 = vmatmul.f32.gmra.mxu0 %v256
  %v281 = vpop.f32.mrf.mxu0
  %v282 = vadd.f32 %v251, %v281
  %283 = vmatmul.f32.gmra.mxu0 %v259
  %v284 = vpop.f32.mrf.mxu0
  %v285 = vadd.f32 %v252, %v284
  %286 = vmatmul.f32.gmra.mxu0 %v262
  %v287 = vpop.f32.mrf.mxu0
  %v288 = vadd.f32 %v253, %v287
  %289 = vdwg.mxu0
  %v290 = vld [vmem:[%s3 + $0x30] sm:$0xff]
  %v291 = vld [vmem:[%s3 + $0x38] sm:$0xff]
  %v292 = vld [vmem:[%s3 + $0x40] sm:$0xff]
  %v293 = vld [vmem:[%s3 + $0x48] sm:$0xff]
  %v294 = vld [vmem:[%s3 + $0x130] sm:$0xff]
  %v295 = vld [vmem:[%s3 + $0x138] sm:$0xff]
  %v296 = vld [vmem:[%s3 + $0x140] sm:$0x3f]
  %v298 = vsel %vm254, %v200, 0
  %v301 = vsel %vm254, %v203, 0
  %v304 = vsel %vm254, %v206, 0
  %306 = vmatpush.msra.mxu0 0.0
  %307 = vmatpush.msra.mxu0 0.0
  %308 = vmatpush.msra.mxu0 0.0
  %309 = vmatpush.msra.mxu0 0.0
  %310 = vmatpush.msra.mxu0 0.0
  %311 = vmatpush.msra.mxu0 0.0
  %312 = vmatpush.msra.mxu0 0.0
  %313 = vmatpush.msra.mxu0 0.0
  %314 = vmatpush.msra.mxu0 0.0
  %315 = vmatpush.msra.mxu0 0.0
  %316 = vmatpush.msra.mxu0 0.0
  %317 = vmatpush.msra.mxu0 0.0
  %318 = vmatpush.msra.mxu0 %v293
  %319 = vmatpush.msra.mxu0 %v292
  %320 = vmatpush.msra.mxu0 %v291
  %321 = vmatpush.msra.mxu0 %v290
  %322 = vmatmul.f32.gmra.mxu0 %v298
  %v323 = vpop.f32.mrf.mxu0
  %v324 = vadd.f32 %v294, %v323
  %325 = vmatmul.f32.gmra.mxu0 %v301
  %v326 = vpop.f32.mrf.mxu0
  %v327 = vadd.f32 %v295, %v326
  %328 = vmatmul.f32.gmra.mxu0 %v304
  %v329 = vpop.f32.mrf.mxu0
  %v330 = vadd.f32 %v296, %v329
  %331 = vdwg.mxu0
  %v332 = vld [vmem:[%s3 + $0x100] sm:$0xff]
  %v333 = vld [vmem:[%s3 + $0x108] sm:$0xff]
  %v334 = vld [vmem:[%s3 + $0x110] sm:$0x3f]
  %vm335 = vcmask 64512
  %v337 = vsel %vm335, %v282, 0
  %v340 = vsel %vm335, %v285, 0
  %v343 = vsel %vm335, %v288, 0
  %v346 = vsel %vm335, %v324, 0
  %v349 = vsel %vm335, %v327, 0
  %v352 = vsel %vm335, %v330, 0
  %354 = vmatpush.xpose.msra.mxu0 0.0
  %355 = vmatpush.xpose.msra.mxu0 0.0
  %356 = vmatpush.xpose.msra.mxu0 0.0
  %357 = vmatpush.xpose.msra.mxu0 0.0
  %358 = vmatpush.xpose.msra.mxu0 0.0
  %359 = vmatpush.xpose.msra.mxu0 0.0
  %360 = vmatpush.xpose.msra.mxu0 0.0
  %361 = vmatpush.xpose.msra.mxu0 0.0
  %362 = vmatpush.xpose.msra.mxu0 0.0
  %363 = vmatpush.xpose.msra.mxu0 0.0
  %364 = vmatpush.xpose.msra.mxu0 0.0
  %365 = vmatpush.xpose.msra.mxu0 0.0
  %366 = vmatpush.xpose.msra.mxu0 0.0
  %367 = vmatpush.xpose.msra.mxu0 %v352
  %368 = vmatpush.xpose.msra.mxu0 %v349
  %369 = vmatpush.xpose.msra.mxu0 %v346
  %370 = vmatmul.f32.gmra.mxu0 %v337
  %v371 = vpop.f32.mrf.mxu0
  %v372 = vadd.f32 %v332, %v371
  %373 = vmatmul.f32.gmra.mxu0 %v340
  %v374 = vpop.f32.mrf.mxu0
  %v375 = vadd.f32 %v333, %v374
  %376 = vmatmul.f32.gmra.mxu0 %v343
  %v377 = vpop.f32.mrf.mxu0
  %v378 = vadd.f32 %v334, %v377
  %379 = vdwg.mxu0
  %vm380 = vcmask 179200
  %v381 = vsel %vm380, %v372, -inf
  %382 = vmax.xlane.f32.xlu0 %v381
  %v383 = vpop.xlane.xlu0 %382
  %v384 = vsel %vm380, %v375, -inf
  %385 = vmax.xlane.f32.xlu0 %v384
  %v386 = vpop.xlane.xlu0 %385
  %vm387 = vcmask 177152
  %v388 = vsel %vm387, %v378, -inf
  %389 = vmax.xlane.f32.xlu0 %v388
  %v390 = vpop.xlane.xlu0 %389
  %v391 = vsub.f32 %v372, %v383
  %v392 = vsub.f32 %v375, %v386
  %v393 = vsub.f32 %v378, %v390
  %v394 = vmul.f32 %v391, 1.442695
  %v395 = vpow.pop %v394
  %v396 = vmul.f32 %v392, 1.442695
  %v397 = vpow.pop %v396
  %v398 = vmul.f32 %v393, 1.442695
  %v399 = vpow.pop %v398
  %v400 = vsel %vm380, %v395, 0.0
  %401 = vadd.xlane.f32.xlu0 %v400
  %v402 = vpop.xlane.xlu0 %401
  %v403 = vsel %vm380, %v397, 0.0
  %404 = vadd.xlane.f32.xlu0 %v403
  %v405 = vpop.xlane.xlu0 %404
  %v406 = vsel %vm387, %v399, 0.0
  %407 = vadd.xlane.f32.xlu0 %v406
  %v408 = vpop.xlane.xlu0 %407
  %v409 = vrcp.pop %v402
  %v410 = vrcp.pop %v405
  %v411 = vrcp.pop %v408
  %v412 = vmul.f32 %v395, %v409
  %v413 = vmul.f32 %v397, %v410
  %v414 = vmul.f32 %v399, %v411
  %415 = vrot.lane.b32.xlu0 %v324, 96
  %v416 = vpop.permute.xlu0 %415
  %417 = vrot.lane.b32.xlu0 %v327, 96
  %v418 = vpop.permute.xlu0 %417
  %419 = vrot.lane.b32.xlu0 %v330, 96
  %v420 = vpop.permute.xlu0 %419
  %v424 = vsel %vm380, %v412, 0
  %v427 = vsel %vm380, %v413, 0
  %v430 = vsel %vm380, %v414, 0
  %v432 = vsel %vm217, %v420, 0
  %434 = vmatpush.msra.mxu0 0.0
  %435 = vmatpush.msra.mxu0 0.0
  %436 = vmatpush.msra.mxu0 0.0
  %437 = vmatpush.msra.mxu0 0.0
  %438 = vmatpush.msra.mxu0 0.0
  %439 = vmatpush.msra.mxu0 0.0
  %440 = vmatpush.msra.mxu0 0.0
  %441 = vmatpush.msra.mxu0 0.0
  %442 = vmatpush.msra.mxu0 0.0
  %443 = vmatpush.msra.mxu0 0.0
  %444 = vmatpush.msra.mxu0 0.0
  %445 = vmatpush.msra.mxu0 0.0
  %446 = vmatpush.msra.mxu0 0.0
  %447 = vmatpush.msra.mxu0 %v432
  %448 = vmatpush.msra.mxu0 %v418
  %449 = vmatpush.msra.mxu0 %v416
  %450 = vmatmul.f32.gmra.mxu0 %v424
  %v451 = vpop.f32.mrf.mxu0
  %v452 = vadd.f32 0.0, %v451
  %453 = vmatmul.f32.gmra.mxu0 %v427
  %v454 = vpop.f32.mrf.mxu0
  %v455 = vadd.f32 0.0, %v454
  %456 = vmatmul.f32.gmra.mxu0 %v430
  %v457 = vpop.f32.mrf.mxu0
  %v458 = vadd.f32 0.0, %v457
  %459 = vdwg.mxu0
  %460 = vrot.lane.b32.xlu0 %v282, 120
  %v461 = vpop.permute.xlu0 %460
  %462 = vrot.lane.b32.xlu0 %v285, 120
  %v463 = vpop.permute.xlu0 %462
  %464 = vrot.lane.b32.xlu0 %v288, 120
  %v465 = vpop.permute.xlu0 %464
  %466 = vrot.lane.b32.xlu0 %v324, 120
  %v467 = vpop.permute.xlu0 %466
  %468 = vrot.lane.b32.xlu0 %v327, 120
  %v469 = vpop.permute.xlu0 %468
  %470 = vrot.lane.b32.xlu0 %v330, 120
  %v471 = vpop.permute.xlu0 %470
  %v472 = vsel %vm335, %v461, 0
  %v474 = vsel %vm335, %v463, 0
  %v476 = vsel %vm335, %v465, 0
  %v478 = vsel %vm335, %v467, 0
  %v480 = vsel %vm335, %v469, 0
  %v482 = vsel %vm335, %v471, 0
  %484 = vmatpush.xpose.msra.mxu0 0.0
  %485 = vmatpush.xpose.msra.mxu0 0.0
  %486 = vmatpush.xpose.msra.mxu0 0.0
  %487 = vmatpush.xpose.msra.mxu0 0.0
  %488 = vmatpush.xpose.msra.mxu0 0.0
  %489 = vmatpush.xpose.msra.mxu0 0.0
  %490 = vmatpush.xpose.msra.mxu0 0.0
  %491 = vmatpush.xpose.msra.mxu0 0.0
  %492 = vmatpush.xpose.msra.mxu0 0.0
  %493 = vmatpush.xpose.msra.mxu0 0.0
  %494 = vmatpush.xpose.msra.mxu0 0.0
  %495 = vmatpush.xpose.msra.mxu0 0.0
  %496 = vmatpush.xpose.msra.mxu0 0.0
  %497 = vmatpush.xpose.msra.mxu0 %v482
  %498 = vmatpush.xpose.msra.mxu0 %v480
  %499 = vmatpush.xpose.msra.mxu0 %v478
  %500 = vmatmul.f32.gmra.mxu0 %v472
  %v501 = vpop.f32.mrf.mxu0
  %v502 = vadd.f32 %v332, %v501
  %503 = vmatmul.f32.gmra.mxu0 %v474
  %v504 = vpop.f32.mrf.mxu0
  %v505 = vadd.f32 %v333, %v504
  %506 = vmatmul.f32.gmra.mxu0 %v476
  %v507 = vpop.f32.mrf.mxu0
  %v508 = vadd.f32 %v334, %v507
  %509 = vdwg.mxu0
  %v510 = vsel %vm380, %v502, -inf
  %511 = vmax.xlane.f32.xlu0 %v510
  %v512 = vpop.xlane.xlu0 %511
  %v513 = vsel %vm380, %v505, -inf
  %514 = vmax.xlane.f32.xlu0 %v513
  %v515 = vpop.xlane.xlu0 %514
  %v516 = vsel %vm387, %v508, -inf
  %517 = vmax.xlane.f32.xlu0 %v516
  %v518 = vpop.xlane.xlu0 %517
  %v519 = vsub.f32 %v502, %v512
  %v520 = vsub.f32 %v505, %v515
  %v521 = vsub.f32 %v508, %v518
  %v522 = vmul.f32 %v519, 1.442695
  %v523 = vpow.pop %v522
  %v524 = vmul.f32 %v520, 1.442695
  %v525 = vpow.pop %v524
  %v526 = vmul.f32 %v521, 1.442695
  %v527 = vpow.pop %v526
  %v528 = vsel %vm380, %v523, 0.0
  %529 = vadd.xlane.f32.xlu0 %v528
  %v530 = vpop.xlane.xlu0 %529
  %v531 = vsel %vm380, %v525, 0.0
  %532 = vadd.xlane.f32.xlu0 %v531
  %v533 = vpop.xlane.xlu0 %532
  %v534 = vsel %vm387, %v527, 0.0
  %535 = vadd.xlane.f32.xlu0 %v534
  %v536 = vpop.xlane.xlu0 %535
  %v537 = vrcp.pop %v530
  %v538 = vrcp.pop %v533
  %v539 = vrcp.pop %v536
  %v540 = vmul.f32 %v523, %v537
  %v541 = vmul.f32 %v525, %v538
  %v542 = vmul.f32 %v527, %v539
  %543 = vrot.lane.b32.xlu0 %v324, 88
  %v544 = vpop.permute.xlu0 %543
  %545 = vrot.lane.b32.xlu0 %v327, 88
  %v546 = vpop.permute.xlu0 %545
  %547 = vrot.lane.b32.xlu0 %v330, 88
  %v548 = vpop.permute.xlu0 %547
  %v552 = vsel %vm380, %v540, 0
  %v555 = vsel %vm380, %v541, 0
  %v558 = vsel %vm380, %v542, 0
  %v560 = vsel %vm217, %v548, 0
  %562 = vmatpush.msra.mxu0 0.0
  %563 = vmatpush.msra.mxu0 0.0
  %564 = vmatpush.msra.mxu0 0.0
  %565 = vmatpush.msra.mxu0 0.0
  %566 = vmatpush.msra.mxu0 0.0
  %567 = vmatpush.msra.mxu0 0.0
  %568 = vmatpush.msra.mxu0 0.0
  %569 = vmatpush.msra.mxu0 0.0
  %570 = vmatpush.msra.mxu0 0.0
  %571 = vmatpush.msra.mxu0 0.0
  %572 = vmatpush.msra.mxu0 0.0
  %573 = vmatpush.msra.mxu0 0.0
  %574 = vmatpush.msra.mxu0 0.0
  %575 = vmatpush.msra.mxu0 %v560
  %576 = vmatpush.msra.mxu0 %v546
  %577 = vmatpush.msra.mxu0 %v544
  %578 = vmatmul.f32.gmra.mxu0 %v552
  %v579 = vpop.f32.mrf.mxu0
  %v580 = vadd.f32 0.0, %v579
  %581 = vmatmul.f32.gmra.mxu0 %v555
  %v582 = vpop.f32.mrf.mxu0
  %v583 = vadd.f32 0.0, %v582
  %584 = vmatmul.f32.gmra.mxu0 %v558
  %v585 = vpop.f32.mrf.mxu0
  %v586 = vadd.f32 0.0, %v585
  %587 = vdwg.mxu0
  %588 = vrot.lane.b32.xlu0 %v282, 112
  %v589 = vpop.permute.xlu0 %588
  %590 = vrot.lane.b32.xlu0 %v285, 112
  %v591 = vpop.permute.xlu0 %590
  %592 = vrot.lane.b32.xlu0 %v288, 112
  %v593 = vpop.permute.xlu0 %592
  %594 = vrot.lane.b32.xlu0 %v324, 112
  %v595 = vpop.permute.xlu0 %594
  %596 = vrot.lane.b32.xlu0 %v327, 112
  %v597 = vpop.permute.xlu0 %596
  %598 = vrot.lane.b32.xlu0 %v330, 112
  %v599 = vpop.permute.xlu0 %598
  %v600 = vsel %vm335, %v589, 0
  %v602 = vsel %vm335, %v591, 0
  %v604 = vsel %vm335, %v593, 0
  %v606 = vsel %vm335, %v595, 0
  %v608 = vsel %vm335, %v597, 0
  %v610 = vsel %vm335, %v599, 0
  %612 = vmatpush.xpose.msra.mxu0 0.0
  %613 = vmatpush.xpose.msra.mxu0 0.0
  %614 = vmatpush.xpose.msra.mxu0 0.0
  %615 = vmatpush.xpose.msra.mxu0 0.0
  %616 = vmatpush.xpose.msra.mxu0 0.0
  %617 = vmatpush.xpose.msra.mxu0 0.0
  %618 = vmatpush.xpose.msra.mxu0 0.0
  %619 = vmatpush.xpose.msra.mxu0 0.0
  %620 = vmatpush.xpose.msra.mxu0 0.0
  %621 = vmatpush.xpose.msra.mxu0 0.0
  %622 = vmatpush.xpose.msra.mxu0 0.0
  %623 = vmatpush.xpose.msra.mxu0 0.0
  %624 = vmatpush.xpose.msra.mxu0 0.0
  %625 = vmatpush.xpose.msra.mxu0 %v610
  %626 = vmatpush.xpose.msra.mxu0 %v608
  %627 = vmatpush.xpose.msra.mxu0 %v606
  %628 = vmatmul.f32.gmra.mxu0 %v600
  %v629 = vpop.f32.mrf.mxu0
  %v630 = vadd.f32 %v332, %v629
  %631 = vmatmul.f32.gmra.mxu0 %v602
  %v632 = vpop.f32.mrf.mxu0
  %v633 = vadd.f32 %v333, %v632
  %634 = vmatmul.f32.gmra.mxu0 %v604
  %v635 = vpop.f32.mrf.mxu0
  %v636 = vadd.f32 %v334, %v635
  %637 = vdwg.mxu0
  %v638 = vsel %vm380, %v630, -inf
  %639 = vmax.xlane.f32.xlu0 %v638
  %v640 = vpop.xlane.xlu0 %639
  %v641 = vsel %vm380, %v633, -inf
  %642 = vmax.xlane.f32.xlu0 %v641
  %v643 = vpop.xlane.xlu0 %642
  %v644 = vsel %vm387, %v636, -inf
  %645 = vmax.xlane.f32.xlu0 %v644
  %v646 = vpop.xlane.xlu0 %645
  %v647 = vsub.f32 %v630, %v640
  %v648 = vsub.f32 %v633, %v643
  %v649 = vsub.f32 %v636, %v646
  %v650 = vmul.f32 %v647, 1.442695
  %v651 = vpow.pop %v650
  %v652 = vmul.f32 %v648, 1.442695
  %v653 = vpow.pop %v652
  %v654 = vmul.f32 %v649, 1.442695
  %v655 = vpow.pop %v654
  %v656 = vsel %vm380, %v651, 0.0
  %657 = vadd.xlane.f32.xlu0 %v656
  %v658 = vpop.xlane.xlu0 %657
  %v659 = vsel %vm380, %v653, 0.0
  %660 = vadd.xlane.f32.xlu0 %v659
  %v661 = vpop.xlane.xlu0 %660
  %v662 = vsel %vm387, %v655, 0.0
  %663 = vadd.xlane.f32.xlu0 %v662
  %v664 = vpop.xlane.xlu0 %663
  %v665 = vrcp.pop %v658
  %v666 = vrcp.pop %v661
  %v667 = vrcp.pop %v664
  %v668 = vmul.f32 %v651, %v665
  %v669 = vmul.f32 %v653, %v666
  %v670 = vmul.f32 %v655, %v667
  %671 = vrot.lane.b32.xlu0 %v324, 80
  %v672 = vpop.permute.xlu0 %671
  %673 = vrot.lane.b32.xlu0 %v327, 80
  %v674 = vpop.permute.xlu0 %673
  %675 = vrot.lane.b32.xlu0 %v330, 80
  %v676 = vpop.permute.xlu0 %675
  %v680 = vsel %vm380, %v668, 0
  %v683 = vsel %vm380, %v669, 0
  %v686 = vsel %vm380, %v670, 0
  %v688 = vsel %vm217, %v676, 0
  %690 = vmatpush.msra.mxu0 0.0
  %691 = vmatpush.msra.mxu0 0.0
  %692 = vmatpush.msra.mxu0 0.0
  %693 = vmatpush.msra.mxu0 0.0
  %694 = vmatpush.msra.mxu0 0.0
  %695 = vmatpush.msra.mxu0 0.0
  %696 = vmatpush.msra.mxu0 0.0
  %697 = vmatpush.msra.mxu0 0.0
  %698 = vmatpush.msra.mxu0 0.0
  %699 = vmatpush.msra.mxu0 0.0
  %700 = vmatpush.msra.mxu0 0.0
  %701 = vmatpush.msra.mxu0 0.0
  %702 = vmatpush.msra.mxu0 0.0
  %703 = vmatpush.msra.mxu0 %v688
  %704 = vmatpush.msra.mxu0 %v674
  %705 = vmatpush.msra.mxu0 %v672
  %706 = vmatmul.f32.gmra.mxu0 %v680
  %v707 = vpop.f32.mrf.mxu0
  %v708 = vadd.f32 0.0, %v707
  %709 = vmatmul.f32.gmra.mxu0 %v683
  %v710 = vpop.f32.mrf.mxu0
  %v711 = vadd.f32 0.0, %v710
  %712 = vmatmul.f32.gmra.mxu0 %v686
  %v713 = vpop.f32.mrf.mxu0
  %v714 = vadd.f32 0.0, %v713
  %715 = vdwg.mxu0
  %716 = vrot.lane.b32.xlu0 %v282, 104
  %v717 = vpop.permute.xlu0 %716
  %718 = vrot.lane.b32.xlu0 %v285, 104
  %v719 = vpop.permute.xlu0 %718
  %720 = vrot.lane.b32.xlu0 %v288, 104
  %v721 = vpop.permute.xlu0 %720
  %722 = vrot.lane.b32.xlu0 %v324, 104
  %v723 = vpop.permute.xlu0 %722
  %724 = vrot.lane.b32.xlu0 %v327, 104
  %v725 = vpop.permute.xlu0 %724
  %726 = vrot.lane.b32.xlu0 %v330, 104
  %v727 = vpop.permute.xlu0 %726
  %v728 = vsel %vm335, %v717, 0
  %v730 = vsel %vm335, %v719, 0
  %v732 = vsel %vm335, %v721, 0
  %v734 = vsel %vm335, %v723, 0
  %v736 = vsel %vm335, %v725, 0
  %v738 = vsel %vm335, %v727, 0
  %740 = vmatpush.xpose.msra.mxu0 0.0
  %741 = vmatpush.xpose.msra.mxu0 0.0
  %742 = vmatpush.xpose.msra.mxu0 0.0
  %743 = vmatpush.xpose.msra.mxu0 0.0
  %744 = vmatpush.xpose.msra.mxu0 0.0
  %745 = vmatpush.xpose.msra.mxu0 0.0
  %746 = vmatpush.xpose.msra.mxu0 0.0
  %747 = vmatpush.xpose.msra.mxu0 0.0
  %748 = vmatpush.xpose.msra.mxu0 0.0
  %749 = vmatpush.xpose.msra.mxu0 0.0
  %750 = vmatpush.xpose.msra.mxu0 0.0
  %751 = vmatpush.xpose.msra.mxu0 0.0
  %752 = vmatpush.xpose.msra.mxu0 0.0
  %753 = vmatpush.xpose.msra.mxu0 %v738
  %754 = vmatpush.xpose.msra.mxu0 %v736
  %755 = vmatpush.xpose.msra.mxu0 %v734
  %756 = vmatmul.f32.gmra.mxu0 %v728
  %v757 = vpop.f32.mrf.mxu0
  %v758 = vadd.f32 %v332, %v757
  %759 = vmatmul.f32.gmra.mxu0 %v730
  %v760 = vpop.f32.mrf.mxu0
  %v761 = vadd.f32 %v333, %v760
  %762 = vmatmul.f32.gmra.mxu0 %v732
  %v763 = vpop.f32.mrf.mxu0
  %v764 = vadd.f32 %v334, %v763
  %765 = vdwg.mxu0
  %v766 = vsel %vm380, %v758, -inf
  %767 = vmax.xlane.f32.xlu0 %v766
  %v768 = vpop.xlane.xlu0 %767
  %v769 = vsel %vm380, %v761, -inf
  %770 = vmax.xlane.f32.xlu0 %v769
  %v771 = vpop.xlane.xlu0 %770
  %v772 = vsel %vm387, %v764, -inf
  %773 = vmax.xlane.f32.xlu0 %v772
  %v774 = vpop.xlane.xlu0 %773
  %v775 = vsub.f32 %v758, %v768
  %v776 = vsub.f32 %v761, %v771
  %v777 = vsub.f32 %v764, %v774
  %v778 = vmul.f32 %v775, 1.442695
  %v779 = vpow.pop %v778
  %v780 = vmul.f32 %v776, 1.442695
  %v781 = vpow.pop %v780
  %v782 = vmul.f32 %v777, 1.442695
  %v783 = vpow.pop %v782
  %v784 = vsel %vm380, %v779, 0.0
  %785 = vadd.xlane.f32.xlu0 %v784
  %v786 = vpop.xlane.xlu0 %785
  %v787 = vsel %vm380, %v781, 0.0
  %788 = vadd.xlane.f32.xlu0 %v787
  %v789 = vpop.xlane.xlu0 %788
  %v790 = vsel %vm387, %v783, 0.0
  %791 = vadd.xlane.f32.xlu0 %v790
  %v792 = vpop.xlane.xlu0 %791
  %v793 = vrcp.pop %v786
  %v794 = vrcp.pop %v789
  %v795 = vrcp.pop %v792
  %v796 = vmul.f32 %v779, %v793
  %v797 = vmul.f32 %v781, %v794
  %v798 = vmul.f32 %v783, %v795
  %799 = vrot.lane.b32.xlu0 %v324, 72
  %v800 = vpop.permute.xlu0 %799
  %801 = vrot.lane.b32.xlu0 %v327, 72
  %v802 = vpop.permute.xlu0 %801
  %803 = vrot.lane.b32.xlu0 %v330, 72
  %v804 = vpop.permute.xlu0 %803
  %v808 = vsel %vm380, %v796, 0
  %v811 = vsel %vm380, %v797, 0
  %v814 = vsel %vm380, %v798, 0
  %v816 = vsel %vm217, %v804, 0
  %818 = vmatpush.msra.mxu0 0.0
  %819 = vmatpush.msra.mxu0 0.0
  %820 = vmatpush.msra.mxu0 0.0
  %821 = vmatpush.msra.mxu0 0.0
  %822 = vmatpush.msra.mxu0 0.0
  %823 = vmatpush.msra.mxu0 0.0
  %824 = vmatpush.msra.mxu0 0.0
  %825 = vmatpush.msra.mxu0 0.0
  %826 = vmatpush.msra.mxu0 0.0
  %827 = vmatpush.msra.mxu0 0.0
  %828 = vmatpush.msra.mxu0 0.0
  %829 = vmatpush.msra.mxu0 0.0
  %830 = vmatpush.msra.mxu0 0.0
  %831 = vmatpush.msra.mxu0 %v816
  %832 = vmatpush.msra.mxu0 %v802
  %833 = vmatpush.msra.mxu0 %v800
  %834 = vmatmul.f32.gmra.mxu0 %v808
  %v835 = vpop.f32.mrf.mxu0
  %v836 = vadd.f32 0.0, %v835
  %837 = vmatmul.f32.gmra.mxu0 %v811
  %v838 = vpop.f32.mrf.mxu0
  %v839 = vadd.f32 0.0, %v838
  %840 = vmatmul.f32.gmra.mxu0 %v814
  %v841 = vpop.f32.mrf.mxu0
  %v842 = vadd.f32 0.0, %v841
  %843 = vdwg.mxu0
  %847 = vrot.lane.b32.xlu0 %v580, 8
  %v848 = vpop.permute.xlu0 %847
  %849 = vrot.lane.b32.xlu0 %v583, 8
  %v850 = vpop.permute.xlu0 %849
  %851 = vrot.lane.b32.xlu0 %v586, 8
  %v852 = vpop.permute.xlu0 %851
  %859 = vrot.lane.b32.xlu0 %v708, 16
  %v860 = vpop.permute.xlu0 %859
  %861 = vrot.lane.b32.xlu0 %v711, 16
  %v862 = vpop.permute.xlu0 %861
  %863 = vrot.lane.b32.xlu0 %v714, 16
  %v864 = vpop.permute.xlu0 %863
  %871 = vrot.lane.b32.xlu0 %v836, 24
  %v872 = vpop.permute.xlu0 %871
  %873 = vrot.lane.b32.xlu0 %v839, 24
  %v874 = vpop.permute.xlu0 %873
  %875 = vrot.lane.b32.xlu0 %v842, 24
  %v876 = vpop.permute.xlu0 %875
  %v880 = vsel %vm335, %v452, %v848
  %v881 = vsel %vm335, %v455, %v850
  %v882 = vsel %vm335, %v458, %v852
  %vm883 = vcmask 130048
  %v884 = vsel %vm883, %v880, %v860
  %v885 = vsel %vm883, %v881, %v862
  %v886 = vsel %vm883, %v882, %v864
  %vm887 = vcmask 195584
  %v888 = vsel %vm887, %v884, %v872
  %v889 = vsel %vm887, %v885, %v874
  %v890 = vsel %vm887, %v886, %v876
  %v891 = vld [vmem:[%s3 + $0x50] sm:$0xff]
  %v892 = vld [vmem:[%s3 + $0x58] sm:$0xff]
  %v893 = vld [vmem:[%s3 + $0x60] sm:$0xff]
  %v894 = vld [vmem:[%s3 + $0x68] sm:$0xff]
  %v895 = vld [vmem:[%s3 + $0x148] sm:$0x1]
  %v896 = vperm.slane %v895, 0
  %v898 = vsel %vm254, %v888, 0
  %v901 = vsel %vm254, %v889, 0
  %v904 = vsel %vm254, %v890, 0
  %906 = vmatpush.msra.mxu0 0.0
  %907 = vmatpush.msra.mxu0 0.0
  %908 = vmatpush.msra.mxu0 0.0
  %909 = vmatpush.msra.mxu0 0.0
  %910 = vmatpush.msra.mxu0 0.0
  %911 = vmatpush.msra.mxu0 0.0
  %912 = vmatpush.msra.mxu0 0.0
  %913 = vmatpush.msra.mxu0 0.0
  %914 = vmatpush.msra.mxu0 0.0
  %915 = vmatpush.msra.mxu0 0.0
  %916 = vmatpush.msra.mxu0 0.0
  %917 = vmatpush.msra.mxu0 0.0
  %918 = vmatpush.msra.mxu0 %v894
  %919 = vmatpush.msra.mxu0 %v893
  %920 = vmatpush.msra.mxu0 %v892
  %921 = vmatpush.msra.mxu0 %v891
  %922 = vmatmul.f32.gmra.mxu0 %v898
  %v923 = vpop.f32.mrf.mxu0
  %v924 = vadd.f32 %v896, %v923
  %925 = vmatmul.f32.gmra.mxu0 %v901
  %v926 = vpop.f32.mrf.mxu0
  %v927 = vadd.f32 %v896, %v926
  %928 = vmatmul.f32.gmra.mxu0 %v904
  %v929 = vpop.f32.mrf.mxu0
  %v930 = vadd.f32 %v896, %v929
  %931 = vdwg.mxu0
  %v932 = vadd.f32 %v239, %v924
  %v933 = vadd.f32 %v242, %v927
  %v934 = vadd.f32 %v245, %v930
  %v935 = vld [vmem:[%s3 + $0x160] sm:$0x1]
  %v936 = vld [vmem:[%s3 + $0x168] sm:$0x1]
  %v937 = vsel %vm254, %v932, 0.0
  %938 = vadd.xlane.f32.xlu0 %v937
  %v939 = vpop.xlane.xlu0 %938
  %v940 = vsel %vm254, %v933, 0.0
  %941 = vadd.xlane.f32.xlu0 %v940
  %v942 = vpop.xlane.xlu0 %941
  %vm943 = vcmask 259072
  %v944 = vsel %vm943, %v934, 0.0
  %945 = vadd.xlane.f32.xlu0 %v944
  %v946 = vpop.xlane.xlu0 %945
  %v947 = vrcp.pop 32.0
  %v948 = vmul.f32 32.0, %v947
  %v949 = vsub.f32 1.0, %v948
  %v950 = vmul.f32 %v947, %v949
  %v951 = vadd.f32 %v947, %v950
  %vm952 = vweird.f32 %v947
  %v953 = vsel %vm952, %v947, %v951
  %v954 = vmul.f32 %v939, %v953
  %v955 = vmul.f32 %v942, %v953
  %v956 = vmul.f32 %v946, %v953
  %v957 = vsub.f32 %v932, %v954
  %v958 = vsub.f32 %v933, %v955
  %v959 = vsub.f32 %v934, %v956
  %v960 = vmul.f32 %v957, %v957
  %v961 = vmul.f32 %v958, %v958
  %v962 = vmul.f32 %v959, %v959
  %v963 = vsel %vm254, %v960, 0.0
  %964 = vadd.xlane.f32.xlu0 %v963
  %v965 = vpop.xlane.xlu0 %964
  %v966 = vsel %vm254, %v961, 0.0
  %967 = vadd.xlane.f32.xlu0 %v966
  %v968 = vpop.xlane.xlu0 %967
  %v969 = vsel %vm943, %v962, 0.0
  %970 = vadd.xlane.f32.xlu0 %v969
  %v971 = vpop.xlane.xlu0 %970
  %v972 = vmul.f32 %v965, %v953
  %v973 = vmul.f32 %v968, %v953
  %v974 = vmul.f32 %v971, %v953
  %v975 = vadd.f32 %v972, 1e-05
  %v976 = vadd.f32 %v973, 1e-05
  %v977 = vadd.f32 %v974, 1e-05
  %v978 = vrsqrt.pop %v975
  %v979 = vmul.f32 %v978, %v975
  %v980 = vmul.f32 %v979, %v978
  %v981 = vmul.f32 0.5, %v980
  %v982 = vsub.f32 1.5, %v981
  %v983 = vmul.f32 %v978, %v982
  %vm984 = vweird.f32 %v975
  %vm985 = vweird.f32 %v978
  %vm986 = vmor %vm984, %vm985
  %v987 = vsel %vm986, %v978, %v983
  %v988 = vrsqrt.pop %v976
  %v989 = vmul.f32 %v988, %v976
  %v990 = vmul.f32 %v989, %v988
  %v991 = vmul.f32 0.5, %v990
  %v992 = vsub.f32 1.5, %v991
  %v993 = vmul.f32 %v988, %v992
  %vm994 = vweird.f32 %v976
  %vm995 = vweird.f32 %v988
  %vm996 = vmor %vm994, %vm995
  %v997 = vsel %vm996, %v988, %v993
  %v998 = vrsqrt.pop %v977
  %v999 = vmul.f32 %v998, %v977
  %v1000 = vmul.f32 %v999, %v998
  %v1001 = vmul.f32 0.5, %v1000
  %v1002 = vsub.f32 1.5, %v1001
  %v1003 = vmul.f32 %v998, %v1002
  %vm1004 = vweird.f32 %v977
  %vm1005 = vweird.f32 %v998
  %vm1006 = vmor %vm1004, %vm1005
  %v1007 = vsel %vm1006, %v998, %v1003
  %v1008 = vmul.f32 %v957, %v987
  %v1009 = vmul.f32 %v958, %v997
  %v1010 = vmul.f32 %v959, %v1007
  %v1011 = vperm.slane %v935, 0
  %v1012 = vmul.f32 %v1008, %v1011
  %v1013 = vmul.f32 %v1009, %v1011
  %v1014 = vmul.f32 %v1010, %v1011
  %v1015 = vperm.slane %v936, 0
  %v1016 = vadd.f32 %v1012, %v1015
  %v1017 = vadd.f32 %v1013, %v1015
  %v1018 = vadd.f32 %v1014, %v1015
  %v1019 = vld [vmem:[%s3 + $0x70] sm:$0xff]
  %v1020 = vld [vmem:[%s3 + $0x78] sm:$0xff]
  %v1021 = vld [vmem:[%s3 + $0x80] sm:$0xff]
  %v1022 = vld [vmem:[%s3 + $0x88] sm:$0xff]
  %v1023 = vld [vmem:[%s3 + $0x150] sm:$0x1]
  %v1024 = vperm.slane %v1023, 0
  %v1026 = vsel %vm254, %v1016, 0
  %v1029 = vsel %vm254, %v1017, 0
  %v1032 = vsel %vm254, %v1018, 0
  %1034 = vmatpush.msra.mxu0 0.0
  %1035 = vmatpush.msra.mxu0 0.0
  %1036 = vmatpush.msra.mxu0 0.0
  %1037 = vmatpush.msra.mxu0 0.0
  %1038 = vmatpush.msra.mxu0 0.0
  %1039 = vmatpush.msra.mxu0 0.0
  %1040 = vmatpush.msra.mxu0 0.0
  %1041 = vmatpush.msra.mxu0 0.0
  %1042 = vmatpush.msra.mxu0 0.0
  %1043 = vmatpush.msra.mxu0 0.0
  %1044 = vmatpush.msra.mxu0 0.0
  %1045 = vmatpush.msra.mxu0 0.0
  %1046 = vmatpush.msra.mxu0 %v1022
  %1047 = vmatpush.msra.mxu0 %v1021
  %1048 = vmatpush.msra.mxu0 %v1020
  %1049 = vmatpush.msra.mxu0 %v1019
  %1050 = vmatmul.f32.gmra.mxu0 %v1026
  %v1051 = vpop.f32.mrf.mxu0
  %v1052 = vadd.f32 %v1024, %v1051
  %1053 = vmatmul.f32.gmra.mxu0 %v1029
  %v1054 = vpop.f32.mrf.mxu0
  %v1055 = vadd.f32 %v1024, %v1054
  %1056 = vmatmul.f32.gmra.mxu0 %v1032
  %v1057 = vpop.f32.mrf.mxu0
  %v1058 = vadd.f32 %v1024, %v1057
  %1059 = vdwg.mxu0
  %v1060 = vmax.f32 %v1052, 0.0
  %v1061 = vmax.f32 %v1055, 0.0
  %v1062 = vmax.f32 %v1058, 0.0
  %v1063 = vld [vmem:[%s3 + $0x90] sm:$0xff]
  %v1064 = vld [vmem:[%s3 + $0x98] sm:$0xff]
  %v1065 = vld [vmem:[%s3 + $0xa0] sm:$0xff]
  %v1066 = vld [vmem:[%s3 + $0xa8] sm:$0xff]
  %v1067 = vld [vmem:[%s3 + $0xb0] sm:$0xff]
  %v1068 = vld [vmem:[%s3 + $0xb8] sm:$0xff]
  %v1069 = vld [vmem:[%s3 + $0xc0] sm:$0xff]
  %v1070 = vld [vmem:[%s3 + $0xc8] sm:$0xff]
  %v1071 = vld [vmem:[%s3 + $0x158] sm:$0x1]
  %v1072 = vperm.slane %v1071, 0
  %v1074 = vsel %vm87, %v1060, 0
  %v1077 = vsel %vm87, %v1061, 0
  %v1080 = vsel %vm87, %v1062, 0
  %1082 = vmatpush.msra.mxu0 0.0
  %1083 = vmatpush.msra.mxu0 0.0
  %1084 = vmatpush.msra.mxu0 0.0
  %1085 = vmatpush.msra.mxu0 0.0
  %1086 = vmatpush.msra.mxu0 0.0
  %1087 = vmatpush.msra.mxu0 0.0
  %1088 = vmatpush.msra.mxu0 0.0
  %1089 = vmatpush.msra.mxu0 0.0
  %1090 = vmatpush.msra.mxu0 %v1070
  %1091 = vmatpush.msra.mxu0 %v1069
  %1092 = vmatpush.msra.mxu0 %v1068
  %1093 = vmatpush.msra.mxu0 %v1067
  %1094 = vmatpush.msra.mxu0 %v1066
  %1095 = vmatpush.msra.mxu0 %v1065
  %1096 = vmatpush.msra.mxu0 %v1064
  %1097 = vmatpush.msra.mxu0 %v1063
  %1098 = vmatmul.f32.gmra.mxu0 %v1074
  %v1099 = vpop.f32.mrf.mxu0
  %v1100 = vadd.f32 %v1072, %v1099
  %1101 = vmatmul.f32.gmra.mxu0 %v1077
  %v1102 = vpop.f32.mrf.mxu0
  %v1103 = vadd.f32 %v1072, %v1102
  %1104 = vmatmul.f32.gmra.mxu0 %v1080
  %v1105 = vpop.f32.mrf.mxu0
  %v1106 = vadd.f32 %v1072, %v1105
  %1107 = vdwg.mxu0
  %v1108 = vadd.f32 %v1016, %v1100
  %v1109 = vadd.f32 %v1017, %v1103
  %v1110 = vadd.f32 %v1018, %v1106
  %v1111 = vld [vmem:[%s3 + $0x170] sm:$0x1]
  %v1112 = vld [vmem:[%s3 + $0x178] sm:$0x1]
  %v1113 = vsel %vm254, %v1108, 0.0
  %1114 = vadd.xlane.f32.xlu0 %v1113
  %v1115 = vpop.xlane.xlu0 %1114
  %v1116 = vsel %vm254, %v1109, 0.0
  %1117 = vadd.xlane.f32.xlu0 %v1116
  %v1118 = vpop.xlane.xlu0 %1117
  %v1119 = vsel %vm943, %v1110, 0.0
  %1120 = vadd.xlane.f32.xlu0 %v1119
  %v1121 = vpop.xlane.xlu0 %1120
  %v1122 = vmul.f32 %v1115, %v953
  %v1123 = vmul.f32 %v1118, %v953
  %v1124 = vmul.f32 %v1121, %v953
  %v1125 = vsub.f32 %v1108, %v1122
  %v1126 = vsub.f32 %v1109, %v1123
  %v1127 = vsub.f32 %v1110, %v1124
  %v1128 = vmul.f32 %v1125, %v1125
  %v1129 = vmul.f32 %v1126, %v1126
  %v1130 = vmul.f32 %v1127, %v1127
  %v1131 = vsel %vm254, %v1128, 0.0
  %1132 = vadd.xlane.f32.xlu0 %v1131
  %v1133 = vpop.xlane.xlu0 %1132
  %v1134 = vsel %vm254, %v1129, 0.0
  %1135 = vadd.xlane.f32.xlu0 %v1134
  %v1136 = vpop.xlane.xlu0 %1135
  %v1137 = vsel %vm943, %v1130, 0.0
  %1138 = vadd.xlane.f32.xlu0 %v1137
  %v1139 = vpop.xlane.xlu0 %1138
  %v1140 = vmul.f32 %v1133, %v953
  %v1141 = vmul.f32 %v1136, %v953
  %v1142 = vmul.f32 %v1139, %v953
  %v1143 = vadd.f32 %v1140, 1e-05
  %v1144 = vadd.f32 %v1141, 1e-05
  %v1145 = vadd.f32 %v1142, 1e-05
  %v1146 = vrsqrt.pop %v1143
  %v1147 = vmul.f32 %v1146, %v1143
  %v1148 = vmul.f32 %v1147, %v1146
  %v1149 = vmul.f32 0.5, %v1148
  %v1150 = vsub.f32 1.5, %v1149
  %v1151 = vmul.f32 %v1146, %v1150
  %vm1152 = vweird.f32 %v1143
  %vm1153 = vweird.f32 %v1146
  %vm1154 = vmor %vm1152, %vm1153
  %v1155 = vsel %vm1154, %v1146, %v1151
  %v1156 = vrsqrt.pop %v1144
  %v1157 = vmul.f32 %v1156, %v1144
  %v1158 = vmul.f32 %v1157, %v1156
  %v1159 = vmul.f32 0.5, %v1158
  %v1160 = vsub.f32 1.5, %v1159
  %v1161 = vmul.f32 %v1156, %v1160
  %vm1162 = vweird.f32 %v1144
  %vm1163 = vweird.f32 %v1156
  %vm1164 = vmor %vm1162, %vm1163
  %v1165 = vsel %vm1164, %v1156, %v1161
  %v1166 = vrsqrt.pop %v1145
  %v1167 = vmul.f32 %v1166, %v1145
  %v1168 = vmul.f32 %v1167, %v1166
  %v1169 = vmul.f32 0.5, %v1168
  %v1170 = vsub.f32 1.5, %v1169
  %v1171 = vmul.f32 %v1166, %v1170
  %vm1172 = vweird.f32 %v1145
  %vm1173 = vweird.f32 %v1166
  %vm1174 = vmor %vm1172, %vm1173
  %v1175 = vsel %vm1174, %v1166, %v1171
  %v1176 = vmul.f32 %v1125, %v1155
  %v1177 = vmul.f32 %v1126, %v1165
  %v1178 = vmul.f32 %v1127, %v1175
  %v1179 = vperm.slane %v1111, 0
  %v1180 = vmul.f32 %v1176, %v1179
  %v1181 = vmul.f32 %v1177, %v1179
  %v1182 = vmul.f32 %v1178, %v1179
  %v1183 = vperm.slane %v1112, 0
  %v1184 = vadd.f32 %v1180, %v1183
  %v1185 = vadd.f32 %v1181, %v1183
  %v1186 = vadd.f32 %v1182, %v1183
  %v1187 = vld [vmem:[%s3 + $0xd0] sm:$0xff]
  %v1188 = vld [vmem:[%s3 + $0xd8] sm:$0xff]
  %v1189 = vld [vmem:[%s3 + $0xe0] sm:$0xff]
  %v1190 = vld [vmem:[%s3 + $0xe8] sm:$0xff]
  %v1192 = vsel %vm254, %v1184, 0
  %v1195 = vsel %vm254, %v1185, 0
  %v1198 = vsel %vm254, %v1186, 0
  %1200 = vmatpush.msra.mxu0 0.0
  %1201 = vmatpush.msra.mxu0 0.0
  %1202 = vmatpush.msra.mxu0 0.0
  %1203 = vmatpush.msra.mxu0 0.0
  %1204 = vmatpush.msra.mxu0 0.0
  %1205 = vmatpush.msra.mxu0 0.0
  %1206 = vmatpush.msra.mxu0 0.0
  %1207 = vmatpush.msra.mxu0 0.0
  %1208 = vmatpush.msra.mxu0 0.0
  %1209 = vmatpush.msra.mxu0 0.0
  %1210 = vmatpush.msra.mxu0 0.0
  %1211 = vmatpush.msra.mxu0 0.0
  %1212 = vmatpush.msra.mxu0 %v1190
  %1213 = vmatpush.msra.mxu0 %v1189
  %1214 = vmatpush.msra.mxu0 %v1188
  %1215 = vmatpush.msra.mxu0 %v1187
  %1216 = vmatmul.f32.gmra.mxu0 %v1192
  %v1217 = vpop.f32.mrf.mxu0
  %v1218 = vadd.f32 0.0, %v1217
  %1219 = vmatmul.f32.gmra.mxu0 %v1195
  %v1220 = vpop.f32.mrf.mxu0
  %v1221 = vadd.f32 0.0, %v1220
  %1222 = vmatmul.f32.gmra.mxu0 %v1198
  %v1223 = vpop.f32.mrf.mxu0
  %v1224 = vadd.f32 0.0, %v1223
  %1225 = vdwg.mxu0
  %v1226 = vmax.f32 %v1218, 0.0
  %v1227 = vmax.f32 %v1221, 0.0
  %v1228 = vmax.f32 %v1224, 0.0
  %v1229 = vld [vmem:[%s2 + $0x40] sm:$0xff]
  %v1230 = vld [vmem:[%s2 + $0x48] sm:$0xff]
  %v1231 = vld [vmem:[%s2 + $0x50] sm:$0x7]
  %v1232 = vld [vmem:[%s2 + $0x58] sm:$0x7]
  %1233 = vxpose.xlu0.b32.start [1/16] %v1226, 128
  %1234 = vxpose.xlu0.b32.cont [2/16] %v1227, 128
  %1235 = vxpose.xlu0.b32.cont [3/16] 0.0, 128
  %1236 = vxpose.xlu0.b32.cont [4/16] 0.0, 128
  %1237 = vxpose.xlu0.b32.cont [5/16] 0.0, 128
  %1238 = vxpose.xlu0.b32.cont [6/16] 0.0, 128
  %1239 = vxpose.xlu0.b32.cont [7/16] 0.0, 128
  %1240 = vxpose.xlu0.b32.cont [8/16] 0.0, 128
  %1241 = vxpose.xlu0.b32.cont [9/16] 0.0, 128
  %1242 = vxpose.xlu0.b32.cont [10/16] 0.0, 128
  %1243 = vxpose.xlu0.b32.cont [11/16] 0.0, 128
  %1244 = vxpose.xlu0.b32.cont [12/16] 0.0, 128
  %1245 = vxpose.xlu0.b32.cont [13/16] 0.0, 128
  %1246 = vxpose.xlu0.b32.cont [14/16] 0.0, 128
  %1247 = vxpose.xlu0.b32.cont [15/16] 0.0, 128
  %1248 = vxpose.xlu0.b32.end [16/16] 0.0, 128
  %v1249 = vpop.trf.xlu0
  %v1250 = vpop.trf.xlu0
  %v1251 = vpop.trf.xlu0
  %v1252 = vpop.trf.xlu0
  %v1253 = vpop.trf.xlu0
  %v1254 = vpop.trf.xlu0
  %v1255 = vpop.trf.xlu0
  %v1256 = vpop.trf.xlu0
  %v1257 = vpop.trf.xlu0
  %v1258 = vpop.trf.xlu0
  %v1259 = vpop.trf.xlu0
  %v1260 = vpop.trf.xlu0
  %v1261 = vpop.trf.xlu0
  %v1262 = vpop.trf.xlu0
  %v1263 = vpop.trf.xlu0
  %v1264 = vpop.trf.xlu0
  %vm1265 = vcmask 89088
  %v1267 = vsel %vm1265, %v1249, 0
  %v1270 = vsel %vm148, %v1231, 0
  %v1273 = vsel %vm148, %v1232, 0
  %1275 = vmatpush.msra.mxu0 0.0
  %1276 = vmatpush.msra.mxu0 0.0
  %1277 = vmatpush.msra.mxu0 0.0
  %1278 = vmatpush.msra.mxu0 0.0
  %1279 = vmatpush.msra.mxu0 0.0
  %1280 = vmatpush.msra.mxu0 0.0
  %1281 = vmatpush.msra.mxu0 0.0
  %1282 = vmatpush.msra.mxu0 0.0
  %1283 = vmatpush.msra.mxu0 0.0
  %1284 = vmatpush.msra.mxu0 0.0
  %1285 = vmatpush.msra.mxu0 0.0
  %1286 = vmatpush.msra.mxu0 0.0
  %1287 = vmatpush.msra.mxu0 0.0
  %1288 = vmatpush.msra.mxu0 0.0
  %1289 = vmatpush.msra.mxu0 %v1270
  %1290 = vmatpush.msra.mxu0 %v1229
  %1291 = vmatmul.f32.gmra.mxu0 %v1267
  %v1292 = vpop.f32.mrf.mxu0
  %v1293 = vadd.f32 0.0, %v1292
  %1294 = vdwg.mxu0
  %1295 = vmatpush.msra.mxu0 0.0
  %1296 = vmatpush.msra.mxu0 0.0
  %1297 = vmatpush.msra.mxu0 0.0
  %1298 = vmatpush.msra.mxu0 0.0
  %1299 = vmatpush.msra.mxu0 0.0
  %1300 = vmatpush.msra.mxu0 0.0
  %1301 = vmatpush.msra.mxu0 0.0
  %1302 = vmatpush.msra.mxu0 0.0
  %1303 = vmatpush.msra.mxu0 0.0
  %1304 = vmatpush.msra.mxu0 0.0
  %1305 = vmatpush.msra.mxu0 0.0
  %1306 = vmatpush.msra.mxu0 0.0
  %1307 = vmatpush.msra.mxu0 0.0
  %1308 = vmatpush.msra.mxu0 0.0
  %1309 = vmatpush.msra.mxu0 %v1273
  %1310 = vmatpush.msra.mxu0 %v1230
  %1311 = vmatmul.f32.gmra.mxu0 %v1267
  %v1312 = vpop.f32.mrf.mxu0
  %v1313 = vadd.f32 0.0, %v1312
  %1314 = vdwg.mxu0
  %vm1317 = vcmask 1044480
  %v1318 = vrot.slane %v1227, 3
  %v1319 = vrot.slane %v1228, 3
  %v1320 = vsel %vm1317, %v1318, %v1319
  %1323 = vxpose.xlu0.b32.start [1/16] %v1320, 128
  %1324 = vxpose.xlu0.b32.cont [2/16] %v1319, 128
  %1325 = vxpose.xlu0.b32.cont [3/16] 0.0, 128
  %1326 = vxpose.xlu0.b32.cont [4/16] 0.0, 128
  %1327 = vxpose.xlu0.b32.cont [5/16] 0.0, 128
  %1328 = vxpose.xlu0.b32.cont [6/16] 0.0, 128
  %1329 = vxpose.xlu0.b32.cont [7/16] 0.0, 128
  %1330 = vxpose.xlu0.b32.cont [8/16] 0.0, 128
  %1331 = vxpose.xlu0.b32.cont [9/16] 0.0, 128
  %1332 = vxpose.xlu0.b32.cont [10/16] 0.0, 128
  %1333 = vxpose.xlu0.b32.cont [11/16] 0.0, 128
  %1334 = vxpose.xlu0.b32.cont [12/16] 0.0, 128
  %1335 = vxpose.xlu0.b32.cont [13/16] 0.0, 128
  %1336 = vxpose.xlu0.b32.cont [14/16] 0.0, 128
  %1337 = vxpose.xlu0.b32.cont [15/16] 0.0, 128
  %1338 = vxpose.xlu0.b32.end [16/16] 0.0, 128
  %v1339 = vpop.trf.xlu0
  %v1340 = vpop.trf.xlu0
  %v1341 = vpop.trf.xlu0
  %v1342 = vpop.trf.xlu0
  %v1343 = vpop.trf.xlu0
  %v1344 = vpop.trf.xlu0
  %v1345 = vpop.trf.xlu0
  %v1346 = vpop.trf.xlu0
  %v1347 = vpop.trf.xlu0
  %v1348 = vpop.trf.xlu0
  %v1349 = vpop.trf.xlu0
  %v1350 = vpop.trf.xlu0
  %v1351 = vpop.trf.xlu0
  %v1352 = vpop.trf.xlu0
  %v1353 = vpop.trf.xlu0
  %v1354 = vpop.trf.xlu0
  %v1356 = vsel %vm1265, %v1339, 0
  %1358 = vmatpush.msra.mxu0 0.0
  %1359 = vmatpush.msra.mxu0 0.0
  %1360 = vmatpush.msra.mxu0 0.0
  %1361 = vmatpush.msra.mxu0 0.0
  %1362 = vmatpush.msra.mxu0 0.0
  %1363 = vmatpush.msra.mxu0 0.0
  %1364 = vmatpush.msra.mxu0 0.0
  %1365 = vmatpush.msra.mxu0 0.0
  %1366 = vmatpush.msra.mxu0 0.0
  %1367 = vmatpush.msra.mxu0 0.0
  %1368 = vmatpush.msra.mxu0 0.0
  %1369 = vmatpush.msra.mxu0 0.0
  %1370 = vmatpush.msra.mxu0 0.0
  %1371 = vmatpush.msra.mxu0 0.0
  %1372 = vmatpush.msra.mxu0 %v1270
  %1373 = vmatpush.msra.mxu0 %v1229
  %1374 = vmatmul.f32.gmra.mxu0 %v1356
  %v1375 = vpop.f32.mrf.mxu0
  %v1376 = vadd.f32 0.0, %v1375
  %1377 = vdwg.mxu0
  %1378 = vmatpush.msra.mxu0 0.0
  %1379 = vmatpush.msra.mxu0 0.0
  %1380 = vmatpush.msra.mxu0 0.0
  %1381 = vmatpush.msra.mxu0 0.0
  %1382 = vmatpush.msra.mxu0 0.0
  %1383 = vmatpush.msra.mxu0 0.0
  %1384 = vmatpush.msra.mxu0 0.0
  %1385 = vmatpush.msra.mxu0 0.0
  %1386 = vmatpush.msra.mxu0 0.0
  %1387 = vmatpush.msra.mxu0 0.0
  %1388 = vmatpush.msra.mxu0 0.0
  %1389 = vmatpush.msra.mxu0 0.0
  %1390 = vmatpush.msra.mxu0 0.0
  %1391 = vmatpush.msra.mxu0 0.0
  %1392 = vmatpush.msra.mxu0 %v1273
  %1393 = vmatpush.msra.mxu0 %v1230
  %1394 = vmatmul.f32.gmra.mxu0 %v1356
  %v1395 = vpop.f32.mrf.mxu0
  %v1396 = vadd.f32 0.0, %v1395
  %1397 = vdwg.mxu0
  %v1400 = vrot.slane %v1376, 2
  %v1401 = vrot.slane %v1396, 2
  %v1404 = vsel %vm217, %v1293, %v1400
  %v1405 = vsel %vm217, %v1313, %v1401
  %v1406 = vld [vmem:[%s3 + $0xf0] sm:$0xff]
  %v1407 = vld [vmem:[%s3 + $0xf8] sm:$0xf]
  %v1409 = vsel %vm335, %v1406, 0
  %v1412 = vsel %vm335, %v1407, 0
  %1414 = vmatpush.msra.mxu0 0.0
  %1415 = vmatpush.msra.mxu0 0.0
  %1416 = vmatpush.msra.mxu0 0.0
  %1417 = vmatpush.msra.mxu0 0.0
  %1418 = vmatpush.msra.mxu0 0.0
  %1419 = vmatpush.msra.mxu0 0.0
  %1420 = vmatpush.msra.mxu0 0.0
  %1421 = vmatpush.msra.mxu0 0.0
  %1422 = vmatpush.msra.mxu0 0.0
  %1423 = vmatpush.msra.mxu0 0.0
  %1424 = vmatpush.msra.mxu0 0.0
  %1425 = vmatpush.msra.mxu0 0.0
  %1426 = vmatpush.msra.mxu0 0.0
  %1427 = vmatpush.msra.mxu0 0.0
  %1428 = vmatpush.msra.mxu0 0.0
  %1429 = vmatpush.msra.mxu0 %v17
  %1430 = vmatmul.f32.gmra.mxu0 %v1409
  %v1431 = vpop.f32.mrf.mxu0
  %v1432 = vadd.f32 0.0, %v1431
  %1433 = vmatmul.f32.gmra.mxu0 %v1412
  %v1434 = vpop.f32.mrf.mxu0
  %v1435 = vadd.f32 0.0, %v1434
  %1436 = vdwg.mxu0
  %1437 = vmatpush.msra.mxu0 0.0
  %1438 = vmatpush.msra.mxu0 0.0
  %1439 = vmatpush.msra.mxu0 0.0
  %1440 = vmatpush.msra.mxu0 0.0
  %1441 = vmatpush.msra.mxu0 0.0
  %1442 = vmatpush.msra.mxu0 0.0
  %1443 = vmatpush.msra.mxu0 0.0
  %1444 = vmatpush.msra.mxu0 0.0
  %1445 = vmatpush.msra.mxu0 0.0
  %1446 = vmatpush.msra.mxu0 0.0
  %1447 = vmatpush.msra.mxu0 0.0
  %1448 = vmatpush.msra.mxu0 0.0
  %1449 = vmatpush.msra.mxu0 0.0
  %1450 = vmatpush.msra.mxu0 0.0
  %1451 = vmatpush.msra.mxu0 0.0
  %1452 = vmatpush.msra.mxu0 %v18
  %1453 = vmatmul.f32.gmra.mxu0 %v1409
  %v1454 = vpop.f32.mrf.mxu0
  %v1455 = vadd.f32 0.0, %v1454
  %1456 = vmatmul.f32.gmra.mxu0 %v1412
  %v1457 = vpop.f32.mrf.mxu0
  %v1458 = vadd.f32 0.0, %v1457
  %1459 = vdwg.mxu0
  %v1460 = vmax.f32 %v1432, 0.0
  %v1461 = vmax.f32 %v1455, 0.0
  %v1462 = vmax.f32 %v1435, 0.0
  %v1463 = vmax.f32 %v1458, 0.0
  %v1464 = vld [vmem:[%s2 + $0x60] sm:$0xff]
  %v1465 = vld [vmem:[%s2 + $0x68] sm:$0xff]
  %v1466 = vld [vmem:[%s2 + $0x70] sm:$0xff]
  %v1467 = vld [vmem:[%s2 + $0x78] sm:$0xff]
  %v1468 = vld [vmem:[%s2 + $0x80] sm:$0xff]
  %v1469 = vld [vmem:[%s2 + $0x88] sm:$0xff]
  %v1470 = vld [vmem:[%s2 + $0x90] sm:$0xff]
  %v1471 = vld [vmem:[%s2 + $0x98] sm:$0xff]
  %v1472 = vld [vmem:[%s2 + $0xa0] sm:$0xff]
  %v1473 = vld [vmem:[%s2 + $0xa8] sm:$0xff]
  %v1474 = vld [vmem:[%s2 + $0xb0] sm:$0xff]
  %v1475 = vld [vmem:[%s2 + $0xb8] sm:$0xff]
  %v1476 = vld [vmem:[%s2 + $0xc0] sm:$0xff]
  %v1477 = vld [vmem:[%s2 + $0xc8] sm:$0xff]
  %v1478 = vld [vmem:[%s2 + $0xd0] sm:$0xff]
  %v1479 = vld [vmem:[%s2 + $0xd8] sm:$0xff]
  %v1480 = vld [vmem:[%s2 + $0xe0] sm:$0xff]
  %v1481 = vld [vmem:[%s2 + $0xe8] sm:$0xff]
  %v1482 = vld [vmem:[%s2 + $0xf0] sm:$0xff]
  %v1483 = vld [vmem:[%s2 + $0xf8] sm:$0xff]
  %v1484 = vld [vmem:[%s2 + $0x100] sm:$0xff]
  %v1485 = vld [vmem:[%s2 + $0x108] sm:$0xff]
  %v1486 = vld [vmem:[%s2 + $0x110] sm:$0xff]
  %v1487 = vld [vmem:[%s2 + $0x118] sm:$0xff]
  %v1488 = vld [vmem:[%s2 + $0x120] sm:$0xff]
  %v1489 = vld [vmem:[%s2 + $0x128] sm:$0xff]
  %v1490 = vld [vmem:[%s2 + $0x130] sm:$0xff]
  %v1491 = vld [vmem:[%s2 + $0x138] sm:$0xff]
  %v1492 = vld [vmem:[%s2 + $0x140] sm:$0xff]
  %v1493 = vld [vmem:[%s2 + $0x148] sm:$0xff]
  %v1494 = vld [vmem:[%s2 + $0x150] sm:$0xff]
  %v1495 = vld [vmem:[%s2 + $0x158] sm:$0xff]
  %v1496 = vld [vmem:[%s2 + $0x160] sm:$0xff]
  %v1497 = vld [vmem:[%s2 + $0x168] sm:$0xff]
  %v1498 = vld [vmem:[%s2 + $0x170] sm:$0xff]
  %v1499 = vld [vmem:[%s2 + $0x178] sm:$0xff]
  %v1500 = vld [vmem:[%s2 + $0x180] sm:$0xff]
  %v1501 = vld [vmem:[%s2 + $0x188] sm:$0xff]
  %v1502 = vld [vmem:[%s2 + $0x190] sm:$0xff]
  %v1503 = vld [vmem:[%s2 + $0x198] sm:$0xff]
  %v1504 = vld [vmem:[%s2 + $0x1a0] sm:$0xff]
  %v1505 = vld [vmem:[%s2 + $0x1a8] sm:$0xff]
  %v1506 = vld [vmem:[%s2 + $0x1b0] sm:$0xff]
  %v1507 = vld [vmem:[%s2 + $0x1b8] sm:$0xff]
  %v1509 = vsel %vm27, %v1461, 0
  %v1512 = vsel %vm27, %v1463, 0
  %1514 = vmatpush.msra.mxu0 %v1494
  %1515 = vmatpush.msra.mxu0 %v1492
  %1516 = vmatpush.msra.mxu0 %v1490
  %1517 = vmatpush.msra.mxu0 %v1488
  %1518 = vmatpush.msra.mxu0 %v1486
  %1519 = vmatpush.msra.mxu0 %v1484
  %1520 = vmatpush.msra.mxu0 %v1482
  %1521 = vmatpush.msra.mxu0 %v1480
  %1522 = vmatpush.msra.mxu0 %v1478
  %1523 = vmatpush.msra.mxu0 %v1476
  %1524 = vmatpush.msra.mxu0 %v1474
  %1525 = vmatpush.msra.mxu0 %v1472
  %1526 = vmatpush.msra.mxu0 %v1470
  %1527 = vmatpush.msra.mxu0 %v1468
  %1528 = vmatpush.msra.mxu0 %v1466
  %1529 = vmatpush.msra.mxu0 %v1464
  %1530 = vmatmul.f32.gmra.mxu0 %v1460
  %v1531 = vpop.f32.mrf.mxu0
  %v1532 = vadd.f32 %v1404, %v1531
  %1533 = vmatmul.f32.gmra.mxu0 %v1462
  %v1534 = vpop.f32.mrf.mxu0
  %v1535 = vadd.f32 %v1400, %v1534
  %1536 = vdwg.mxu0
  %1537 = vmatpush.msra.mxu0 0.0
  %1538 = vmatpush.msra.mxu0 0.0
  %1539 = vmatpush.msra.mxu0 0.0
  %1540 = vmatpush.msra.mxu0 0.0
  %1541 = vmatpush.msra.mxu0 0.0
  %1542 = vmatpush.msra.mxu0 0.0
  %1543 = vmatpush.msra.mxu0 0.0
  %1544 = vmatpush.msra.mxu0 0.0
  %1545 = vmatpush.msra.mxu0 0.0
  %1546 = vmatpush.msra.mxu0 0.0
  %1547 = vmatpush.msra.mxu0 %v1506
  %1548 = vmatpush.msra.mxu0 %v1504
  %1549 = vmatpush.msra.mxu0 %v1502
  %1550 = vmatpush.msra.mxu0 %v1500
  %1551 = vmatpush.msra.mxu0 %v1498
  %1552 = vmatpush.msra.mxu0 %v1496
  %1553 = vmatmul.f32.gmra.mxu0 %v1509
  %v1554 = vpop.f32.mrf.mxu0
  %v1555 = vadd.f32 %v1532, %v1554
  %1556 = vmatmul.f32.gmra.mxu0 %v1512
  %v1557 = vpop.f32.mrf.mxu0
  %v1558 = vadd.f32 %v1535, %v1557
  %1559 = vdwg.mxu0
  %1560 = vmatpush.msra.mxu0 %v1495
  %1561 = vmatpush.msra.mxu0 %v1493
  %1562 = vmatpush.msra.mxu0 %v1491
  %1563 = vmatpush.msra.mxu0 %v1489
  %1564 = vmatpush.msra.mxu0 %v1487
  %1565 = vmatpush.msra.mxu0 %v1485
  %1566 = vmatpush.msra.mxu0 %v1483
  %1567 = vmatpush.msra.mxu0 %v1481
  %1568 = vmatpush.msra.mxu0 %v1479
  %1569 = vmatpush.msra.mxu0 %v1477
  %1570 = vmatpush.msra.mxu0 %v1475
  %1571 = vmatpush.msra.mxu0 %v1473
  %1572 = vmatpush.msra.mxu0 %v1471
  %1573 = vmatpush.msra.mxu0 %v1469
  %1574 = vmatpush.msra.mxu0 %v1467
  %1575 = vmatpush.msra.mxu0 %v1465
  %1576 = vmatmul.f32.gmra.mxu0 %v1460
  %v1577 = vpop.f32.mrf.mxu0
  %v1578 = vadd.f32 %v1405, %v1577
  %1579 = vmatmul.f32.gmra.mxu0 %v1462
  %v1580 = vpop.f32.mrf.mxu0
  %v1581 = vadd.f32 %v1401, %v1580
  %1582 = vdwg.mxu0
  %1583 = vmatpush.msra.mxu0 0.0
  %1584 = vmatpush.msra.mxu0 0.0
  %1585 = vmatpush.msra.mxu0 0.0
  %1586 = vmatpush.msra.mxu0 0.0
  %1587 = vmatpush.msra.mxu0 0.0
  %1588 = vmatpush.msra.mxu0 0.0
  %1589 = vmatpush.msra.mxu0 0.0
  %1590 = vmatpush.msra.mxu0 0.0
  %1591 = vmatpush.msra.mxu0 0.0
  %1592 = vmatpush.msra.mxu0 0.0
  %1593 = vmatpush.msra.mxu0 %v1507
  %1594 = vmatpush.msra.mxu0 %v1505
  %1595 = vmatpush.msra.mxu0 %v1503
  %1596 = vmatpush.msra.mxu0 %v1501
  %1597 = vmatpush.msra.mxu0 %v1499
  %1598 = vmatpush.msra.mxu0 %v1497
  %1599 = vmatmul.f32.gmra.mxu0 %v1509
  %v1600 = vpop.f32.mrf.mxu0
  %v1601 = vadd.f32 %v1578, %v1600
  %1602 = vmatmul.f32.gmra.mxu0 %v1512
  %v1603 = vpop.f32.mrf.mxu0
  %v1604 = vadd.f32 %v1581, %v1603
  %1605 = vdwg.mxu0
  %1606 = vst [vmem:[%s4] sm:$0xff] %v1555
  %1607 = vst.msk [vmem:[%s4 + $0x8] sm:$0xff] %vm87, %v1601
  %1608 = vst [vmem:[%s4 + $0x10] sm:$0xf] %v1558
  %vm1609 = vcmask 519168
  %1610 = vst.msk [vmem:[%s4 + $0x18] sm:$0xf] %vm1609, %v1604
  // Predicated region
  $region18: #{transfusion5.1} parent=0 // pred_check
    _
  $region19: #{transfusion5.1} parent=0 // pred_check_branch
    %1612 = sbr.rel (0) target = $region21
  $region20: #{transfusion5.1} parent=0 // pred_region
    _
  $region21: #{transfusion5.1} parent=0 // pred_fallthru
    _
  // Predicated region
  $region22: #{transfusion5.1} parent=0 // pred_check
    _
  $region23: #{transfusion5.1} parent=0 // pred_check_branch
    %1614 = sbr.rel (0) target = $region25
  $region24: #{transfusion5.1} parent=0 // pred_region
    _
  $region25: #{transfusion5.1} parent=0 // pred_fallthru
    _

</llo_original>
